<compile_context>
chip_gen: v6e
topology: v6e:2x2x1
jax: 0.10.0
libtpu: 0.0.40
codegen_flags: <defaults>
</compile_context>

<pallas_src>
import functools
import math

import jax
import jax.numpy as jnp
from jax.experimental import pallas as pl
from jax.experimental.pallas import tpu as pltpu

NUM_JOINTS = 21 + 1            # 22
NPOSE = 6 * NUM_JOINTS         # 132
NROT = 9 * NUM_JOINTS          # 198
J = NUM_JOINTS


# ----------------------------------------------------------------------------
# Fused kernel: affine flow sample + pose-fusion MLP + rot6d Gram-Schmidt.
# One batch row per grid step on axis 0, one tile of samples on axis 1.
# ----------------------------------------------------------------------------
def fused_kernel(shift_s_ref, shift_d_ref, scale_s_ref, scale_d_ref,
                 zs_ref, zd_ref,
                 pw1s_ref, pw1d_ref, pb1_ref, pw2cm_ref, pb2cm_ref,
                 pose_cm_ref, rot_cm_ref, lp_ref,
                 *, rot_chunk):
    f32 = jnp.float32
    bf16 = jnp.bfloat16

    z_s = zs_ref[...]                                   # (TN, 132) f32
    z_d = zd_ref[...]

    # log-prob sample term; per-batch constants (-sum(log_scale) - D*log(2pi))
    # are added in the wrapper.
    lp_ref[...] = -0.5 * jnp.sum(z_s * z_s + z_d * z_d, axis=-1, keepdims=True)

    # conditional affine flow sample (context head hoisted to the wrapper,
    # (1,132) rows broadcast over the sample sublanes)
    samples_s = (z_s * scale_s_ref[...] + shift_s_ref[...]).astype(bf16)
    samples_d = (z_d * scale_d_ref[...] + shift_d_ref[...]).astype(bf16)

    # pose fusion MLP: bf16 operands, f32 accumulation; concat avoided by
    # splitting W1; only the component-major (column-permuted) W2 is applied.
    h = (jnp.dot(samples_s, pw1s_ref[...], preferred_element_type=f32)
         + jnp.dot(samples_d, pw1d_ref[...], preferred_element_type=f32)
         + pb1_ref[...])
    h = jnp.maximum(h, 0.0).astype(bf16)
    pc = jnp.dot(h, pw2cm_ref[...], preferred_element_type=f32) + pb2cm_ref[...]
    pose_cm_ref[...] = pc                               # (TN, 132) component-major

    # rot6d -> rotmat (Gram-Schmidt).  pc lane c*22 + j holds component c of
    # joint j, c in [a1x,a1y,a1z,a2x,a2y,a2z].  Processed in row sub-chunks
    # (read back from pose_cm_ref) to bound vreg live ranges.
    # TODO(synk): on v6e the 22-lane slices sit at lane offsets 0,22,...,110
    #   and cost XLU relayouts; padding component groups to 128 lanes would
    #   remove them at the price of extra MXU output tiles.
    tile_n = z_s.shape[0]
    nchunks = tile_n // rot_chunk
    eps2 = 1e-24                                        # (1e-12)^2, F.normalize eps

    def gram_schmidt_rows(row):
        p = pose_cm_ref[pl.ds(row, rot_chunk), :]       # (chunk, 132)
        a1x, a1y, a1z = p[:, 0 * J:1 * J], p[:, 1 * J:2 * J], p[:, 2 * J:3 * J]
        a2x, a2y, a2z = p[:, 3 * J:4 * J], p[:, 4 * J:5 * J], p[:, 5 * J:6 * J]
        inv_n1 = jax.lax.rsqrt(jnp.maximum(a1x * a1x + a1y * a1y + a1z * a1z, eps2))
        b1x, b1y, b1z = a1x * inv_n1, a1y * inv_n1, a1z * inv_n1
        dot12 = b1x * a2x + b1y * a2y + b1z * a2z
        ux, uy, uz = a2x - dot12 * b1x, a2y - dot12 * b1y, a2z - dot12 * b1z
        inv_n2 = jax.lax.rsqrt(jnp.maximum(ux * ux + uy * uy + uz * uz, eps2))
        b2x, b2y, b2z = ux * inv_n2, uy * inv_n2, uz * inv_n2
        b3x = b1y * b2z - b1z * b2y
        b3y = b1z * b2x - b1x * b2z
        b3z = b1x * b2y - b1y * b2x
        # component-major rotmat slab: [m00,m01,m02,m10,m11,m12,m20,m21,m22] x 22
        comp = jnp.concatenate(
            [b1x, b2x, b3x, b1y, b2y, b3y, b1z, b2z, b3z], axis=-1)   # (chunk, 198)
        rot_cm_ref[pl.ds(row, rot_chunk), :] = comp

    if nchunks == 1:
        gram_schmidt_rows(0)
    else:
        def body(i, carry):
            gram_schmidt_rows(pl.multiple_of(i * rot_chunk, rot_chunk))
            return carry
        jax.lax.fori_loop(0, nchunks, body, 0)


# ----------------------------------------------------------------------------
# Parameter init (deterministic, synthetic) + kernel-packed derived tensors.
# ----------------------------------------------------------------------------
def init_params(key, ctx_dim, fc_hidden=64):
    ks = jax.random.split(key, 6)
    s = 0.02
    f32, bf16 = jnp.float32, jnp.bfloat16
    p = {
        # flow context heads (shift + log_scale)
        "flow_surf_w": s * jax.random.normal(ks[0], (ctx_dim, 2 * NPOSE), f32),
        "flow_surf_b": jnp.zeros((1, 2 * NPOSE), f32),
        "flow_depth_w": s * jax.random.normal(ks[1], (ctx_dim, 2 * NPOSE), f32),
        "flow_depth_b": jnp.zeros((1, 2 * NPOSE), f32),
        # pose_fusion_fc: Linear(264, 256) -> ReLU -> Linear(256, 132)
        "pose_w1": s * jax.random.normal(ks[2], (2 * NPOSE, 256), f32),
        "pose_b1": jnp.zeros((1, 256), f32),
        "pose_w2": s * jax.random.normal(ks[3], (256, NPOSE), f32),
        "pose_b2": jnp.zeros((1, NPOSE), f32),
        # fc_head: Linear(2*ctx_dim, fc_hidden) -> ReLU -> Linear(fc_hidden, 13)
        "fc_w1": s * jax.random.normal(ks[4], (2 * ctx_dim, fc_hidden), f32),
        "fc_b1": jnp.zeros((1, fc_hidden), f32),
        "fc_w2": s * jax.random.normal(ks[5], (fc_hidden, 13), f32),
        "fc_b2": jnp.zeros((1, 13), f32),
        # fc_head init values
        "init_betas": jnp.zeros((1, 1, 10), f32),
        "init_cam": jnp.array([[[0.9, 0.0, 0.0]]], f32),
    }
    # ---- kernel-packed derived tensors (one-time, outside the hot path) ----
    # split W1 so the kernel never concatenates on the lane axis; bf16 MXU copies
    l6 = jnp.arange(NPOSE)
    idx_cm = (l6 % J) * 6 + l6 // J          # pc[:, c*22 + j] = pose6d[:, j*6 + c]
    p["pose_w1_s_bf"] = p["pose_w1"][:NPOSE].astype(bf16)
    p["pose_w1_d_bf"] = p["pose_w1"][NPOSE:].astype(bf16)
    p["pose_w2_cm_bf"] = p["pose_w2"][:, idx_cm].astype(bf16)
    p["pose_b2_cm"] = p["pose_b2"][:, idx_cm]
    return p


# ----------------------------------------------------------------------------
# Tiling helpers
# ----------------------------------------------------------------------------
def _cdiv(a, b):
    return -(-a // b)


def _plan_tiles(n, max_tile=1024):
    """Return (sample_tile, padded_n) with padded_n % sample_tile == 0."""
    if n <= max_tile:
        return n, n
    num_tiles = _cdiv(n, max_tile)
    tile = _cdiv(_cdiv(n, num_tiles), 128) * 128      # 128-row granularity
    return tile, num_tiles * tile


def _pick_rot_chunk(tile_n, target=128):
    """Largest multiple-of-8 divisor of tile_n that is <= target (else full)."""
    if tile_n <= target:
        return tile_n
    c = target - target % 8
    while c >= 8:
        if tile_n % c == 0:
            return c
        c -= 8
    return tile_n


# ----------------------------------------------------------------------------
# Forward pass (mirrors SMPLXFlowFusion.forward)
# ----------------------------------------------------------------------------
def smplx_flow_fusion_forward(params, feats_surfnorms, feats_depth,
                              num_samples=None, z=None, key=None):
    f32 = jnp.float32
    hp = jax.lax.Precision.HIGHEST
    feats_s = feats_surfnorms.astype(f32)
    feats_d = feats_depth.astype(f32)
    B, _ = feats_s.shape

    if z is None:
        kz1, kz2 = jax.random.split(key)
        z_surf = jax.random.normal(kz1, (B, num_samples, NPOSE), f32)
        z_depth = jax.random.normal(kz2, (B, num_samples, NPOSE), f32)
    else:
        z_surf, z_depth = z
        z_surf = z_surf.astype(f32)
        z_depth = z_depth.astype(f32)
        num_samples = z_surf.shape[1]
    N = num_samples

    # ---- per-batch (M<=B) work hoisted out of the kernel, pure XLA ----
    p_s = jnp.dot(feats_s, params["flow_surf_w"], precision=hp) + params["flow_surf_b"]
    p_d = jnp.dot(feats_d, params["flow_depth_w"], precision=hp) + params["flow_depth_b"]
    shift_s, ls_s = p_s[:, :NPOSE], jnp.clip(p_s[:, NPOSE:], -10.0, 10.0)
    shift_d, ls_d = p_d[:, :NPOSE], jnp.clip(p_d[:, NPOSE:], -10.0, 10.0)
    scale_s, scale_d = jnp.exp(ls_s), jnp.exp(ls_d)
    lp_const = (-NPOSE * math.log(2.0 * math.pi)
                - jnp.sum(ls_s, axis=-1) - jnp.sum(ls_d, axis=-1))        # (B,)

    feats = jnp.concatenate([feats_s, feats_d], axis=-1)
    fh = jnp.maximum(jnp.dot(feats, params["fc_w1"], precision=hp) + params["fc_b1"], 0.0)
    off = jnp.dot(fh, params["fc_w2"], precision=hp) + params["fc_b2"]     # (B, 13)

    # ---- sample tiling: pad to a whole number of tiles ----
    tile_n, n_pad = _plan_tiles(N)
    if n_pad != N:
        pad = ((0, 0), (0, n_pad - N), (0, 0))
        z_surf_k = jnp.pad(z_surf, pad)
        z_depth_k = jnp.pad(z_depth, pad)
    else:
        z_surf_k, z_depth_k = z_surf, z_depth
    grid = (B, n_pad // tile_n)
    rot_chunk = _pick_rot_chunk(tile_n)

    row3 = lambda a: a.reshape(B, 1, NPOSE)
    bmap = lambda b, s: (b, 0, 0)          # per-batch rows (constant over samples)
    smap = lambda b, s: (b, s, 0)          # per-sample tiles
    wmap = lambda b, s: (0, 0)             # resident weights

    weight_args = (params["pose_w1_s_bf"], params["pose_w1_d_bf"], params["pose_b1"],
                   params["pose_w2_cm_bf"], params["pose_b2_cm"])

    in_specs = (
        [pl.BlockSpec((None, 1, NPOSE), bmap)] * 4
        + [pl.BlockSpec((None, tile_n, NPOSE), smap)] * 2
        + [pl.BlockSpec(w.shape, wmap) for w in weight_args]
    )
    out_specs = (
        pl.BlockSpec((None, tile_n, NPOSE), smap),   # pose 6d, component-major
        pl.BlockSpec((None, tile_n, NROT), smap),    # rotmats, component-major
        pl.BlockSpec((None, tile_n, 1), smap),       # -0.5 * sum(z^2)
    )
    out_shape = (
        jax.ShapeDtypeStruct((B, n_pad, NPOSE), f32),
        jax.ShapeDtypeStruct((B, n_pad, NROT), f32),
        jax.ShapeDtypeStruct((B, n_pad, 1), f32),
    )

    pose_cm, rot_cm, zz_half = pl.pallas_call(
        functools.partial(fused_kernel, rot_chunk=rot_chunk),
        grid=grid,
        in_specs=in_specs,
        out_specs=out_specs,
        out_shape=out_shape,
        compiler_params=pltpu.CompilerParams(
            dimension_semantics=("parallel", "parallel"),
            vmem_limit_bytes=32 * 1024 * 1024),
    )(row3(shift_s), row3(shift_d), row3(scale_s), row3(scale_d),
      z_surf_k, z_depth_k, *weight_args)

    pose_cm = pose_cm[:, :N]
    rot_cm = rot_cm[:, :N]
    log_prob = zz_half[:, :N, 0] + lp_const[:, None]

    # component-major -> joint-major (free XLA relayout; replaces the v1
    # duplicated pose matmul and the 198x198 permutation matmul)
    pred_pose_6d = pose_cm.reshape(B, N, 6, J).transpose(0, 1, 3, 2).reshape(B, N, NPOSE)
    pred_pose = rot_cm.reshape(B, N, 9, J).transpose(0, 1, 3, 2).reshape(B, N, J, 3, 3)

    pred_smpl_params = {
        "global_orient": pred_pose[:, :, 0:1],          # (B, N, 1, 3, 3)
        "body_pose": pred_pose[:, :, 1:],               # (B, N, 21, 3, 3)
        "betas": jnp.broadcast_to(off[:, None, :10] + params["init_betas"], (B, N, 10)),
    }
    pred_cam = jnp.broadcast_to(off[:, None, 10:] + params["init_cam"], (B, N, 3))

    # torch forward returns the passed-in z (None when sampling internally)
    return pred_smpl_params, pred_cam, log_prob, z, pred_pose_6d


# ----------------------------------------------------------------------------
# Pure-JAX reference (same simplified-flow math; mirrors the kernel's bf16
# MXU operand / f32 accumulation precision choice) for verification.
# ----------------------------------------------------------------------------
def _reference_forward(params, feats_s, feats_d, z_surf, z_depth):
    hp = jax.lax.Precision.HIGHEST
    f32, bf16 = jnp.float32, jnp.bfloat16
    B, _ = feats_s.shape
    N = z_surf.shape[1]

    def flow(feats, w, b, zz):
        p = jnp.dot(feats, w, precision=hp) + b
        shift = p[:, None, :NPOSE]
        ls = jnp.clip(p[:, None, NPOSE:], -10.0, 10.0)
        samples = zz * jnp.exp(ls) + shift
        lp = (-0.5 * jnp.sum(zz * zz, -1) - 0.5 * NPOSE * math.log(2.0 * math.pi)
              - jnp.sum(ls, -1))
        return samples, lp

    s_s, lp_s = flow(feats_s, params["flow_surf_w"], params["flow_surf_b"], z_surf)
    s_d, lp_d = flow(feats_d, params["flow_depth_w"], params["flow_depth_b"], z_depth)
    log_prob = lp_s + lp_d

    cat = jnp.concatenate([s_s, s_d], -1).reshape(B * N, 2 * NPOSE).astype(bf16)
    h = jnp.maximum(jnp.dot(cat, params["pose_w1"].astype(bf16),
                            preferred_element_type=f32) + params["pose_b1"], 0.0)
    p6 = jnp.dot(h.astype(bf16), params["pose_w2"].astype(bf16),
                 preferred_element_type=f32) + params["pose_b2"]

    x = p6.reshape(B * N * NUM_JOINTS, 6)
    a1, a2 = x[:, :3], x[:, 3:]
    b1 = a1 / jnp.maximum(jnp.linalg.norm(a1, axis=-1, keepdims=True), 1e-12)
    u = a2 - jnp.sum(b1 * a2, -1, keepdims=True) * b1
    b2 = u / jnp.maximum(jnp.linalg.norm(u, axis=-1, keepdims=True), 1e-12)
    b3 = jnp.cross(b1, b2)
    rot = jnp.stack([b1, b2, b3], axis=-1).reshape(B, N, NUM_JOINTS, 3, 3)

    feats = jnp.concatenate([feats_s, feats_d], -1)
    fh = jnp.maximum(jnp.dot(feats, params["fc_w1"], precision=hp) + params["fc_b1"], 0.0)
    off = jnp.dot(fh, params["fc_w2"], precision=hp) + params["fc_b2"]
    betas = jnp.broadcast_to(off[:, None, :10] + params["init_betas"], (B, N, 10))
    cam = jnp.broadcast_to(off[:, None, 10:] + params["init_cam"], (B, N, 3))
    return p6.reshape(B, N, NPOSE), rot, log_prob, betas, cam


# ----------------------------------------------------------------------------
if __name__ == "__main__":
    key = jax.random.PRNGKey(0)
    k_params, k_surf, k_depth, kz1, kz2 = jax.random.split(key, 5)

    batch_size = 2
    ctx_dim = 32          # context_feats_dim (per flow); fc_head sees 2*ctx_dim
    num_samples = 4

    params = init_params(k_params, ctx_dim)
    feats_surfnorms = jax.random.normal(k_surf, (batch_size, ctx_dim), jnp.float32)
    feats_depth = jax.random.normal(k_depth, (batch_size, ctx_dim), jnp.float32)
    z_surf = jax.random.normal(kz1, (batch_size, num_samples, NPOSE), jnp.float32)
    z_depth = jax.random.normal(kz2, (batch_size, num_samples, NPOSE), jnp.float32)
    z_in = (z_surf, z_depth)

    out = smplx_flow_fusion_forward(params, feats_surfnorms, feats_depth, z=z_in)
    out = jax.block_until_ready(out)
    pred_smpl_params, pred_cam, log_prob, z_out, pred_pose_6d = out

    # shape checks (match the torch module contract)
    assert pred_smpl_params["global_orient"].shape == (batch_size, num_samples, 1, 3, 3)
    assert pred_smpl_params["body_pose"].shape == (batch_size, num_samples, 21, 3, 3)
    assert pred_smpl_params["betas"].shape == (batch_size, num_samples, 10)
    assert pred_cam.shape == (batch_size, num_samples, 3)
    assert log_prob.shape == (batch_size, num_samples)
    assert pred_pose_6d.shape == (batch_size, num_samples, NPOSE)
    assert z_out is z_in

    # numerical check against a pure-JAX reference with the same latents
    ref6d, refrot, reflp, refbetas, refcam = _reference_forward(
        params, feats_surfnorms, feats_depth, z_surf, z_depth)
    rot = jnp.concatenate([pred_smpl_params["global_orient"],
                           pred_smpl_params["body_pose"]], axis=2)

    def maxdiff(a, b):
        return float(jnp.max(jnp.abs(a - b)))

    assert maxdiff(pred_pose_6d, ref6d) < 5e-2
    assert maxdiff(rot, refrot) < 5e-2
    assert maxdiff(log_prob, reflp) < 1e-2 * (1.0 + float(jnp.max(jnp.abs(reflp))))
    assert maxdiff(pred_smpl_params["betas"], refbetas) < 5e-2
    assert maxdiff(pred_cam, refcam) < 5e-2

    # predicted rotations must be (near-)orthonormal
    rtr = jnp.einsum("bnjik,bnjmk->bnjim", rot, rot)
    assert maxdiff(rtr, jnp.eye(3, dtype=jnp.float32)) < 1e-3
    assert bool(jnp.all(jnp.isfinite(log_prob)))

    print("KERNEL_OK")
</pallas_src>

<mosaic_0001>
module attributes {stable_mosaic.version = 11 : i64} {
  func.func @fused_kernel(%arg0: i32, %arg1: i32, %arg2: memref<1x1x132xf32, #tpu.memory_space<vmem>>, %arg3: memref<1x1x132xf32, #tpu.memory_space<vmem>>, %arg4: memref<1x1x132xf32, #tpu.memory_space<vmem>>, %arg5: memref<1x1x132xf32, #tpu.memory_space<vmem>>, %arg6: memref<1x4x132xf32, #tpu.memory_space<vmem>>, %arg7: memref<1x4x132xf32, #tpu.memory_space<vmem>>, %arg8: memref<132x256xbf16, #tpu.memory_space<vmem>>, %arg9: memref<132x256xbf16, #tpu.memory_space<vmem>>, %arg10: memref<1x256xf32, #tpu.memory_space<vmem>>, %arg11: memref<256x132xbf16, #tpu.memory_space<vmem>>, %arg12: memref<1x132xf32, #tpu.memory_space<vmem>>, %arg13: memref<1x4x132xf32, #tpu.memory_space<vmem>>, %arg14: memref<1x4x198xf32, #tpu.memory_space<vmem>>, %arg15: memref<1x4x1xf32, #tpu.memory_space<vmem>>) attributes {dimension_semantics = [#tpu.dimension_semantics<parallel>, #tpu.dimension_semantics<parallel>], iteration_bounds = array<i64: 2, 1>, scalar_prefetch = 0 : i64, scratch_operands = 0 : i64, tpu.core_type = #tpu.core_type<tc>, window_params = [{transform_indices = @transform_0, window_bounds = array<i64: 1, 1, 132>}, {transform_indices = @transform_1, window_bounds = array<i64: 1, 1, 132>}, {transform_indices = @transform_2, window_bounds = array<i64: 1, 1, 132>}, {transform_indices = @transform_3, window_bounds = array<i64: 1, 1, 132>}, {transform_indices = @transform_4, window_bounds = array<i64: 1, 4, 132>}, {transform_indices = @transform_5, window_bounds = array<i64: 1, 4, 132>}, {pipeline_mode = #tpu.pipeline_mode<synchronous>, transform_indices = @transform_6, window_bounds = array<i64: 132, 256>}, {pipeline_mode = #tpu.pipeline_mode<synchronous>, transform_indices = @transform_7, window_bounds = array<i64: 132, 256>}, {pipeline_mode = #tpu.pipeline_mode<synchronous>, transform_indices = @transform_8, window_bounds = array<i64: 1, 256>}, {pipeline_mode = #tpu.pipeline_mode<synchronous>, transform_indices = @transform_9, window_bounds = array<i64: 256, 132>}, {pipeline_mode = #tpu.pipeline_mode<synchronous>, transform_indices = @transform_10, window_bounds = array<i64: 1, 132>}, {transform_indices = @transform_11, window_bounds = array<i64: 1, 4, 132>}, {transform_indices = @transform_12, window_bounds = array<i64: 1, 4, 198>}, {transform_indices = @transform_13, window_bounds = array<i64: 1, 4, 1>}]} {
    %c0 = arith.constant 0 : index
    %c0_0 = arith.constant 0 : index
    %c0_1 = arith.constant 0 : index
    %0 = vector.load %arg6[%c0, %c0_0, %c0_1] : memref<1x4x132xf32, #tpu.memory_space<vmem>>, vector<1x4x132xf32>
    %1 = vector.shape_cast %0 : vector<1x4x132xf32> to vector<4x132xf32>
    %c0_2 = arith.constant 0 : index
    %c0_3 = arith.constant 0 : index
    %c0_4 = arith.constant 0 : index
    %2 = vector.load %arg7[%c0_2, %c0_3, %c0_4] : memref<1x4x132xf32, #tpu.memory_space<vmem>>, vector<1x4x132xf32>
    %3 = vector.shape_cast %2 : vector<1x4x132xf32> to vector<4x132xf32>
    %4 = arith.mulf %1, %1 : vector<4x132xf32>
    %5 = arith.mulf %3, %3 : vector<4x132xf32>
    %6 = arith.addf %4, %5 : vector<4x132xf32>
    %cst = arith.constant dense<0.000000e+00> : vector<4xf32>
    %7 = vector.multi_reduction <add>, %6, %cst [1] : vector<4x132xf32> to vector<4xf32>
    %8 = vector.shape_cast %7 : vector<4xf32> to vector<4x1xf32>
    %cst_5 = arith.constant -5.000000e-01 : f32
    %9 = vector.broadcast %cst_5 : f32 to vector<4x1xf32>
    %10 = arith.mulf %9, %8 : vector<4x1xf32>
    %c0_6 = arith.constant 0 : index
    %c0_7 = arith.constant 0 : index
    %c0_8 = arith.constant 0 : index
    %11 = vector.load %arg15[%c0_6, %c0_7, %c0_8] : memref<1x4x1xf32, #tpu.memory_space<vmem>>, vector<1x4x1xf32>
    %12 = vector.shape_cast %11 : vector<1x4x1xf32> to vector<4x1xf32>
    %13 = vector.shape_cast %10 : vector<4x1xf32> to vector<1x4x1xf32>
    tpu.vector_store %arg15[%c0_6, %c0_7, %c0_8], %13 {strides = array<i32>} : memref<1x4x1xf32, #tpu.memory_space<vmem>>, vector<1x4x1xf32>,
    %c0_9 = arith.constant 0 : index
    %c0_10 = arith.constant 0 : index
    %c0_11 = arith.constant 0 : index
    %14 = vector.load %arg4[%c0_9, %c0_10, %c0_11] : memref<1x1x132xf32, #tpu.memory_space<vmem>>, vector<1x1x132xf32>
    %15 = vector.shape_cast %14 : vector<1x1x132xf32> to vector<1x132xf32>
    %16 = vector.broadcast %15 : vector<1x132xf32> to vector<4x132xf32>
    %17 = arith.mulf %1, %16 : vector<4x132xf32>
    %c0_12 = arith.constant 0 : index
    %c0_13 = arith.constant 0 : index
    %c0_14 = arith.constant 0 : index
    %18 = vector.load %arg2[%c0_12, %c0_13, %c0_14] : memref<1x1x132xf32, #tpu.memory_space<vmem>>, vector<1x1x132xf32>
    %19 = vector.shape_cast %18 : vector<1x1x132xf32> to vector<1x132xf32>
    %20 = vector.broadcast %19 : vector<1x132xf32> to vector<4x132xf32>
    %21 = arith.addf %17, %20 : vector<4x132xf32>
    %22 = arith.truncf %21 : vector<4x132xf32> to vector<4x132xbf16>
    %c0_15 = arith.constant 0 : index
    %c0_16 = arith.constant 0 : index
    %c0_17 = arith.constant 0 : index
    %23 = vector.load %arg5[%c0_15, %c0_16, %c0_17] : memref<1x1x132xf32, #tpu.memory_space<vmem>>, vector<1x1x132xf32>
    %24 = vector.shape_cast %23 : vector<1x1x132xf32> to vector<1x132xf32>
    %25 = vector.broadcast %24 : vector<1x132xf32> to vector<4x132xf32>
    %26 = arith.mulf %3, %25 : vector<4x132xf32>
    %c0_18 = arith.constant 0 : index
    %c0_19 = arith.constant 0 : index
    %c0_20 = arith.constant 0 : index
    %27 = vector.load %arg3[%c0_18, %c0_19, %c0_20] : memref<1x1x132xf32, #tpu.memory_space<vmem>>, vector<1x1x132xf32>
    %28 = vector.shape_cast %27 : vector<1x1x132xf32> to vector<1x132xf32>
    %29 = vector.broadcast %28 : vector<1x132xf32> to vector<4x132xf32>
    %30 = arith.addf %26, %29 : vector<4x132xf32>
    %31 = arith.truncf %30 : vector<4x132xf32> to vector<4x132xbf16>
    %c0_21 = arith.constant 0 : index
    %c0_22 = arith.constant 0 : index
    %32 = vector.load %arg8[%c0_21, %c0_22] : memref<132x256xbf16, #tpu.memory_space<vmem>>, vector<132x256xbf16>
    %cst_23 = arith.constant dense<0.000000e+00> : vector<4x256xf32>
    %33 = tpu.matmul %22, %32, %cst_23 {dimension_numbers = #tpu.dot_dimension_numbers<[1], [0], [0], [1], [0, 0, 1, 1], [], []>} : vector<4x132xbf16>, vector<132x256xbf16>, vector<4x256xf32> -> vector<4x256xf32>
    %c0_24 = arith.constant 0 : index
    %c0_25 = arith.constant 0 : index
    %34 = vector.load %arg9[%c0_24, %c0_25] : memref<132x256xbf16, #tpu.memory_space<vmem>>, vector<132x256xbf16>
    %cst_26 = arith.constant dense<0.000000e+00> : vector<4x256xf32>
    %35 = tpu.matmul %31, %34, %cst_26 {dimension_numbers = #tpu.dot_dimension_numbers<[1], [0], [0], [1], [0, 0, 1, 1], [], []>} : vector<4x132xbf16>, vector<132x256xbf16>, vector<4x256xf32> -> vector<4x256xf32>
    %36 = arith.addf %33, %35 : vector<4x256xf32>
    %c0_27 = arith.constant 0 : index
    %c0_28 = arith.constant 0 : index
    %37 = vector.load %arg10[%c0_27, %c0_28] : memref<1x256xf32, #tpu.memory_space<vmem>>, vector<1x256xf32>
    %38 = vector.broadcast %37 : vector<1x256xf32> to vector<4x256xf32>
    %39 = arith.addf %36, %38 : vector<4x256xf32>
    %cst_29 = arith.constant 0.000000e+00 : f32
    %40 = vector.broadcast %cst_29 : f32 to vector<4x256xf32>
    %41 = arith.maximumf %39, %40 : vector<4x256xf32>
    %42 = arith.truncf %41 : vector<4x256xf32> to vector<4x256xbf16>
    %c0_30 = arith.constant 0 : index
    %c0_31 = arith.constant 0 : index
    %43 = vector.load %arg11[%c0_30, %c0_31] : memref<256x132xbf16, #tpu.memory_space<vmem>>, vector<256x132xbf16>
    %cst_32 = arith.constant dense<0.000000e+00> : vector<4x132xf32>
    %44 = tpu.matmul %42, %43, %cst_32 {dimension_numbers = #tpu.dot_dimension_numbers<[1], [0], [0], [1], [0, 0, 1, 1], [], []>} : vector<4x256xbf16>, vector<256x132xbf16>, vector<4x132xf32> -> vector<4x132xf32>
    %c0_33 = arith.constant 0 : index
    %c0_34 = arith.constant 0 : index
    %45 = vector.load %arg12[%c0_33, %c0_34] : memref<1x132xf32, #tpu.memory_space<vmem>>, vector<1x132xf32>
    %46 = vector.broadcast %45 : vector<1x132xf32> to vector<4x132xf32>
    %47 = arith.addf %44, %46 : vector<4x132xf32>
    %c0_35 = arith.constant 0 : index
    %c0_36 = arith.constant 0 : index
    %c0_37 = arith.constant 0 : index
    %48 = vector.load %arg13[%c0_35, %c0_36, %c0_37] : memref<1x4x132xf32, #tpu.memory_space<vmem>>, vector<1x4x132xf32>
    %49 = vector.shape_cast %48 : vector<1x4x132xf32> to vector<4x132xf32>
    %50 = vector.shape_cast %47 : vector<4x132xf32> to vector<1x4x132xf32>
    tpu.vector_store %arg13[%c0_35, %c0_36, %c0_37], %50 {strides = array<i32>} : memref<1x4x132xf32, #tpu.memory_space<vmem>>, vector<1x4x132xf32>,
    %c0_38 = arith.constant 0 : index
    %c0_39 = arith.constant 0 : index
    %c0_40 = arith.constant 0 : index
    %51 = vector.load %arg13[%c0_38, %c0_39, %c0_40] : memref<1x4x132xf32, #tpu.memory_space<vmem>>, vector<1x4x132xf32>
    %52 = vector.shape_cast %51 : vector<1x4x132xf32> to vector<4x132xf32>
    %53 = vector.extract_strided_slice %52 {offsets = [0, 0], sizes = [4, 22], strides = [1, 1]} : vector<4x132xf32> to vector<4x22xf32>
    %54 = vector.extract_strided_slice %52 {offsets = [0, 22], sizes = [4, 22], strides = [1, 1]} : vector<4x132xf32> to vector<4x22xf32>
    %55 = vector.extract_strided_slice %52 {offsets = [0, 44], sizes = [4, 22], strides = [1, 1]} : vector<4x132xf32> to vector<4x22xf32>
    %56 = vector.extract_strided_slice %52 {offsets = [0, 66], sizes = [4, 22], strides = [1, 1]} : vector<4x132xf32> to vector<4x22xf32>
    %57 = vector.extract_strided_slice %52 {offsets = [0, 88], sizes = [4, 22], strides = [1, 1]} : vector<4x132xf32> to vector<4x22xf32>
    %58 = vector.extract_strided_slice %52 {offsets = [0, 110], sizes = [4, 22], strides = [1, 1]} : vector<4x132xf32> to vector<4x22xf32>
    %59 = arith.mulf %53, %53 : vector<4x22xf32>
    %60 = arith.mulf %54, %54 : vector<4x22xf32>
    %61 = arith.addf %59, %60 : vector<4x22xf32>
    %62 = arith.mulf %55, %55 : vector<4x22xf32>
    %63 = arith.addf %61, %62 : vector<4x22xf32>
    %cst_41 = arith.constant 1.000000e-24 : f32
    %64 = vector.broadcast %cst_41 : f32 to vector<4x22xf32>
    %65 = arith.maximumf %63, %64 : vector<4x22xf32>
    %66 = math.rsqrt %65 : vector<4x22xf32>
    %67 = arith.mulf %53, %66 : vector<4x22xf32>
    %68 = arith.mulf %54, %66 : vector<4x22xf32>
    %69 = arith.mulf %55, %66 : vector<4x22xf32>
    %70 = arith.mulf %67, %56 : vector<4x22xf32>
    %71 = arith.mulf %68, %57 : vector<4x22xf32>
    %72 = arith.addf %70, %71 : vector<4x22xf32>
    %73 = arith.mulf %69, %58 : vector<4x22xf32>
    %74 = arith.addf %72, %73 : vector<4x22xf32>
    %75 = arith.mulf %74, %67 : vector<4x22xf32>
    %76 = arith.subf %56, %75 : vector<4x22xf32>
    %77 = arith.mulf %74, %68 : vector<4x22xf32>
    %78 = arith.subf %57, %77 : vector<4x22xf32>
    %79 = arith.mulf %74, %69 : vector<4x22xf32>
    %80 = arith.subf %58, %79 : vector<4x22xf32>
    %81 = arith.mulf %76, %76 : vector<4x22xf32>
    %82 = arith.mulf %78, %78 : vector<4x22xf32>
    %83 = arith.addf %81, %82 : vector<4x22xf32>
    %84 = arith.mulf %80, %80 : vector<4x22xf32>
    %85 = arith.addf %83, %84 : vector<4x22xf32>
    %cst_42 = arith.constant 1.000000e-24 : f32
    %86 = vector.broadcast %cst_42 : f32 to vector<4x22xf32>
    %87 = arith.maximumf %85, %86 : vector<4x22xf32>
    %88 = math.rsqrt %87 : vector<4x22xf32>
    %89 = arith.mulf %76, %88 : vector<4x22xf32>
    %90 = arith.mulf %78, %88 : vector<4x22xf32>
    %91 = arith.mulf %80, %88 : vector<4x22xf32>
    %92 = arith.mulf %68, %91 : vector<4x22xf32>
    %93 = arith.mulf %69, %90 : vector<4x22xf32>
    %94 = arith.subf %92, %93 : vector<4x22xf32>
    %95 = arith.mulf %69, %89 : vector<4x22xf32>
    %96 = arith.mulf %67, %91 : vector<4x22xf32>
    %97 = arith.subf %95, %96 : vector<4x22xf32>
    %98 = arith.mulf %67, %90 : vector<4x22xf32>
    %99 = arith.mulf %68, %89 : vector<4x22xf32>
    %100 = arith.subf %98, %99 : vector<4x22xf32>
    %101 = tpu.concatenate %67, %89, %94, %68, %90, %97, %69, %91, %100 in 1 : vector<4x22xf32>, vector<4x22xf32>, vector<4x22xf32>, vector<4x22xf32>, vector<4x22xf32>, vector<4x22xf32>, vector<4x22xf32>, vector<4x22xf32>, vector<4x22xf32> -> vector<4x198xf32>
    %c0_43 = arith.constant 0 : index
    %c0_44 = arith.constant 0 : index
    %c0_45 = arith.constant 0 : index
    %102 = vector.load %arg14[%c0_43, %c0_44, %c0_45] : memref<1x4x198xf32, #tpu.memory_space<vmem>>, vector<1x4x198xf32>
    %103 = vector.shape_cast %102 : vector<1x4x198xf32> to vector<4x198xf32>
    %104 = vector.shape_cast %101 : vector<4x198xf32> to vector<1x4x198xf32>
    tpu.vector_store %arg14[%c0_43, %c0_44, %c0_45], %104 {strides = array<i32>} : memref<1x4x198xf32, #tpu.memory_space<vmem>>, vector<1x4x198xf32>,
    return
  }
  func.func @transform_0(%arg0: i32, %arg1: i32) -> (i32, i32, i32) {
    %c0_i32 = arith.constant 0 : i32
    %c0_i32_0 = arith.constant 0 : i32
    %c0_i32_1 = arith.constant 0 : i32
    return %arg0, %c0_i32, %c0_i32_0 : i32, i32, i32
  }
  func.func @transform_1(%arg0: i32, %arg1: i32) -> (i32, i32, i32) {
    %c0_i32 = arith.constant 0 : i32
    %c0_i32_0 = arith.constant 0 : i32
    %c0_i32_1 = arith.constant 0 : i32
    return %arg0, %c0_i32, %c0_i32_0 : i32, i32, i32
  }
  func.func @transform_2(%arg0: i32, %arg1: i32) -> (i32, i32, i32) {
    %c0_i32 = arith.constant 0 : i32
    %c0_i32_0 = arith.constant 0 : i32
    %c0_i32_1 = arith.constant 0 : i32
    return %arg0, %c0_i32, %c0_i32_0 : i32, i32, i32
  }
  func.func @transform_3(%arg0: i32, %arg1: i32) -> (i32, i32, i32) {
    %c0_i32 = arith.constant 0 : i32
    %c0_i32_0 = arith.constant 0 : i32
    %c0_i32_1 = arith.constant 0 : i32
    return %arg0, %c0_i32, %c0_i32_0 : i32, i32, i32
  }
  func.func @transform_4(%arg0: i32, %arg1: i32) -> (i32, i32, i32) {
    %c0_i32 = arith.constant 0 : i32
    %c0_i32_0 = arith.constant 0 : i32
    return %arg0, %arg1, %c0_i32 : i32, i32, i32
  }
  func.func @transform_5(%arg0: i32, %arg1: i32) -> (i32, i32, i32) {
    %c0_i32 = arith.constant 0 : i32
    %c0_i32_0 = arith.constant 0 : i32
    return %arg0, %arg1, %c0_i32 : i32, i32, i32
  }
  func.func @transform_6(%arg0: i32, %arg1: i32) -> (i32, i32) {
    %c0_i32 = arith.constant 0 : i32
    %c0_i32_0 = arith.constant 0 : i32
    %c0_i32_1 = arith.constant 0 : i32
    return %c0_i32, %c0_i32_0 : i32, i32
  }
  func.func @transform_7(%arg0: i32, %arg1: i32) -> (i32, i32) {
    %c0_i32 = arith.constant 0 : i32
    %c0_i32_0 = arith.constant 0 : i32
    %c0_i32_1 = arith.constant 0 : i32
    return %c0_i32, %c0_i32_0 : i32, i32
  }
  func.func @transform_8(%arg0: i32, %arg1: i32) -> (i32, i32) {
    %c0_i32 = arith.constant 0 : i32
    %c0_i32_0 = arith.constant 0 : i32
    %c0_i32_1 = arith.constant 0 : i32
    return %c0_i32, %c0_i32_0 : i32, i32
  }
  func.func @transform_9(%arg0: i32, %arg1: i32) -> (i32, i32) {
    %c0_i32 = arith.constant 0 : i32
    %c0_i32_0 = arith.constant 0 : i32
    %c0_i32_1 = arith.constant 0 : i32
    return %c0_i32, %c0_i32_0 : i32, i32
  }
  func.func @transform_10(%arg0: i32, %arg1: i32) -> (i32, i32) {
    %c0_i32 = arith.constant 0 : i32
    %c0_i32_0 = arith.constant 0 : i32
    %c0_i32_1 = arith.constant 0 : i32
    return %c0_i32, %c0_i32_0 : i32, i32
  }
  func.func @transform_11(%arg0: i32, %arg1: i32) -> (i32, i32, i32) {
    %c0_i32 = arith.constant 0 : i32
    %c0_i32_0 = arith.constant 0 : i32
    return %arg0, %arg1, %c0_i32 : i32, i32, i32
  }
  func.func @transform_12(%arg0: i32, %arg1: i32) -> (i32, i32, i32) {
    %c0_i32 = arith.constant 0 : i32
    %c0_i32_0 = arith.constant 0 : i32
    return %arg0, %arg1, %c0_i32 : i32, i32, i32
  }
  func.func @transform_13(%arg0: i32, %arg1: i32) -> (i32, i32, i32) {
    %c0_i32 = arith.constant 0 : i32
    %c0_i32_0 = arith.constant 0 : i32
    return %arg0, %arg1, %c0_i32 : i32, i32, i32
  }
}

</mosaic_0001>

<llo_original>
// kernel: tpu_custom_call.1
$region0: #{tpu_custom_call.1}
  #allocation0 [shape = 'u32[]', space=smem, size = 0x4, offset = 0x4, fixed_abs, tag = 'smem constant byte address 0x4 - core index']
  #allocation1 [shape = 'u32[144,128]{1,0:T(1,128)}', space=vmem, size = 0x12000, scoped, tag = 'internal scratch']
  %s0 = inlined_call_operand.vmem [shape: f32[2,1,132], index: 0, kind: input, shape index: {}]
  %s1 = inlined_call_operand.vmem [shape: f32[2,1,132], index: 1, kind: input, shape index: {}]
  %s2 = inlined_call_operand.vmem [shape: f32[2,1,132], index: 2, kind: input, shape index: {}]
  %s3 = inlined_call_operand.vmem [shape: f32[2,1,132], index: 3, kind: input, shape index: {}]
  %s4 = inlined_call_operand.vmem [shape: f32[2,4,132], index: 4, kind: input, shape index: {}]
  %s5 = inlined_call_operand.vmem [shape: f32[2,4,132], index: 5, kind: input, shape index: {}]
  %s6 = inlined_call_operand.vmem [shape: bf16[132,256], index: 6, kind: input, shape index: {}]
  %s7 = inlined_call_operand.vmem [shape: bf16[132,256], index: 7, kind: input, shape index: {}]
  %s8 = inlined_call_operand.vmem [shape: f32[1,256], index: 8, kind: input, shape index: {}]
  %s9 = inlined_call_operand.vmem [shape: bf16[256,132], index: 9, kind: input, shape index: {}]
  %s10 = inlined_call_operand.vmem [shape: f32[1,132], index: 10, kind: input, shape index: {}]
  %s11 = inlined_call_operand.hbm [shape: f32[2,4,132], index: 11, kind: output, shape index: {0}]
  %s12 = inlined_call_operand.hbm [shape: f32[2,4,198], index: 12, kind: output, shape index: {1}]
  %s13 = inlined_call_operand.vmem [shape: f32[2,4,1], index: 13, kind: output, shape index: {2}]
  %14 = xla_tuple %s11, %s12, %s13
  %s15 = sld [smem:[#allocation0]]
  $region93: #{tpu_custom_call.1} parent=0
    _
  %s17 = ssub.s32 1, %s15
  %s18 = scalar_select 0, %s17, %s15
  $region1: #{tpu_custom_call.1} parent=0
    #allocation2 [shape = 'u8[8192]{0}', space=vmem, size = 0x2000, scoped, tag = 'output window, operand 0']
    #allocation3 [shape = 's32[2]{0}', space=sflag, size = 0x8, scoped, tag = 'scoped memory for tpu_custom_call.1']
    #allocation4 [shape = 'u8[8192]{0}', space=vmem, size = 0x2000, scoped, tag = 'output window, operand 1']
    #allocation5 [shape = 's32[2]{0}', space=sflag, size = 0x8, scoped, tag = 'scoped memory for tpu_custom_call.1']
    %19 = vsyncpa [#allocation3], 0
    %s20 = scalar_lea.sflag [#allocation3], 1
    %21 = vsyncpa %s20, 0
    %22 = vsyncpa [#allocation5], 0
    %s23 = scalar_lea.sflag [#allocation5], 1
    %24 = vsyncpa %s23, 0
    loop: start=0, step=1, limit=4
    $region2: #{tpu_custom_call.1} parent=1 // loop_pre_header
      _
    $region3: #{tpu_custom_call.1} parent=1 // loop_header
      %s26 = sphi 0, %s30
      %p27 = scmp.ge.s32.totalorder %s26, 4
      %s33 = sphi 0, %s45
      %s34 = sphi 0, %s41
      %s35 = sphi 0, %s33
      %s36 = sphi 0, %s34
      %s37 = sphi 0, %s35
      %s38 = sphi 0, %s36
      %s48 = sphi 0, %s50
      %s51 = sphi 0, %s48
      %s52 = sphi 0, %s51
      %s68 = sphi 0, %s52
      %s74 = sphi 0, %s76
      %s77 = sphi 0, %s74
      %s78 = sphi 0, %s77
      %s94 = sphi 0, %s78
      %s100 = sphi 0, %s102
      %s103 = sphi 0, %s100
      %s104 = sphi 0, %s103
      %s120 = sphi 0, %s104
      %s126 = sphi 0, %s128
      %s129 = sphi 0, %s126
      %s130 = sphi 0, %s129
      %s146 = sphi 0, %s130
      %s154 = sphi 0, %s156
      %s157 = sphi 0, %s154
      %s158 = sphi 0, %s157
      %s174 = sphi 0, %s158
      %s182 = sphi 0, %s184
      %s185 = sphi 0, %s182
      %s186 = sphi 0, %s185
      %s202 = sphi 0, %s186
      %s206 = sphi 0, %s206
      %s208 = sphi 0, %s206
      %s209 = sphi 0, %s208
      %s223 = sphi 0, %s209
      %s227 = sphi 0, %s227
      %s229 = sphi 0, %s227
      %s230 = sphi 0, %s229
      %s244 = sphi 0, %s230
      %s248 = sphi 0, %s248
      %s250 = sphi 0, %s248
      %s251 = sphi 0, %s250
      %s265 = sphi 0, %s251
      %s269 = sphi 0, %s269
      %s271 = sphi 0, %s269
      %s272 = sphi 0, %s271
      %s286 = sphi 0, %s272
      %s290 = sphi 0, %s290
      %s292 = sphi 0, %s290
      %s293 = sphi 0, %s292
      %s307 = sphi 0, %s293
      %s315 = sphi 0, %s317
      %s318 = sphi 0, %s315
      %s319 = sphi 0, %s318
      %s335 = sphi 0, %s319
      %s343 = sphi 0, %s345
      %s346 = sphi 0, %s343
      %s347 = sphi 0, %s346
      %s363 = sphi 0, %s347
      %s371 = sphi 0, %s373
      %s374 = sphi 0, %s371
      %s375 = sphi 0, %s374
      %s391 = sphi 0, %s375
    $region4: #{tpu_custom_call.1} parent=1 // loop_header_branch
      %29 = sbr.rel (%p27) target = $region8
    $region5: #{tpu_custom_call.1} parent=1 // loop_body
      %s31 = ssub.s32 %s26, 1
      %s32 = ssub.s32 %s26, 2
      %s39 = sadd.s32 1, %s34
      %p40 = scmp.ge.s32.totalorder %s39, 1
      %s41 = scalar_select %p40, 0, %s39
      %s42 = sadd.s32 1, %s33
      %s43 = scalar_select %p40, %s42, %s33
      %p44 = scmp.ge.s32.totalorder %s43, 2
      %s45 = scalar_select %p44, 0, %s43
      %s46 = ssub.s32 %s33, %s45
      %p47 = scmp.eq.s32.totalorder %s46, 0
      %s49 = sadd.s32 %s48, 1
      %s50 = scalar_select %p47, %s48, %s49
      %p53 = pneg %p47
      %p54 = scmp.eq.s32.totalorder %s26, 1
      %p55 = por %p53, %p54
      %p56 = scmp.ne.s32.totalorder %s48, %s51
      %p57 = scmp.eq.s32.totalorder %s26, 0
      %p58 = por %p56, %p57
      %p59 = scmp.ne.s32.totalorder %s48, %s51
      %p60 = scmp.eq.s32.totalorder %s31, 1
      %p61 = por %p59, %p60
      %p62 = scmp.ne.s32.totalorder %s51, %s52
      %p63 = scmp.eq.s32.totalorder %s31, 0
      %p64 = por %p62, %p63
      %p65 = scmp.ne.s32.totalorder %s51, %s52
      %p66 = scmp.eq.s32.totalorder %s32, 1
      %p67 = por %p65, %p66
      %p69 = scmp.ne.s32.totalorder %s52, %s68
      %p70 = scmp.eq.s32.totalorder %s32, 0
      %p71 = por %p69, %p70
      %s72 = ssub.s32 %s33, %s45
      %p73 = scmp.eq.s32.totalorder %s72, 0
      %s75 = sadd.s32 %s74, 1
      %s76 = scalar_select %p73, %s74, %s75
      %p79 = pneg %p73
      %p80 = scmp.eq.s32.totalorder %s26, 1
      %p81 = por %p79, %p80
      %p82 = scmp.ne.s32.totalorder %s74, %s77
      %p83 = scmp.eq.s32.totalorder %s26, 0
      %p84 = por %p82, %p83
      %p85 = scmp.ne.s32.totalorder %s74, %s77
      %p86 = scmp.eq.s32.totalorder %s31, 1
      %p87 = por %p85, %p86
      %p88 = scmp.ne.s32.totalorder %s77, %s78
      %p89 = scmp.eq.s32.totalorder %s31, 0
      %p90 = por %p88, %p89
      %p91 = scmp.ne.s32.totalorder %s77, %s78
      %p92 = scmp.eq.s32.totalorder %s32, 1
      %p93 = por %p91, %p92
      %p95 = scmp.ne.s32.totalorder %s78, %s94
      %p96 = scmp.eq.s32.totalorder %s32, 0
      %p97 = por %p95, %p96
      %s98 = ssub.s32 %s33, %s45
      %p99 = scmp.eq.s32.totalorder %s98, 0
      %s101 = sadd.s32 %s100, 1
      %s102 = scalar_select %p99, %s100, %s101
      %p105 = pneg %p99
      %p106 = scmp.eq.s32.totalorder %s26, 1
      %p107 = por %p105, %p106
      %p108 = scmp.ne.s32.totalorder %s100, %s103
      %p109 = scmp.eq.s32.totalorder %s26, 0
      %p110 = por %p108, %p109
      %p111 = scmp.ne.s32.totalorder %s100, %s103
      %p112 = scmp.eq.s32.totalorder %s31, 1
      %p113 = por %p111, %p112
      %p114 = scmp.ne.s32.totalorder %s103, %s104
      %p115 = scmp.eq.s32.totalorder %s31, 0
      %p116 = por %p114, %p115
      %p117 = scmp.ne.s32.totalorder %s103, %s104
      %p118 = scmp.eq.s32.totalorder %s32, 1
      %p119 = por %p117, %p118
      %p121 = scmp.ne.s32.totalorder %s104, %s120
      %p122 = scmp.eq.s32.totalorder %s32, 0
      %p123 = por %p121, %p122
      %s124 = ssub.s32 %s33, %s45
      %p125 = scmp.eq.s32.totalorder %s124, 0
      %s127 = sadd.s32 %s126, 1
      %s128 = scalar_select %p125, %s126, %s127
      %p131 = pneg %p125
      %p132 = scmp.eq.s32.totalorder %s26, 1
      %p133 = por %p131, %p132
      %p134 = scmp.ne.s32.totalorder %s126, %s129
      %p135 = scmp.eq.s32.totalorder %s26, 0
      %p136 = por %p134, %p135
      %p137 = scmp.ne.s32.totalorder %s126, %s129
      %p138 = scmp.eq.s32.totalorder %s31, 1
      %p139 = por %p137, %p138
      %p140 = scmp.ne.s32.totalorder %s129, %s130
      %p141 = scmp.eq.s32.totalorder %s31, 0
      %p142 = por %p140, %p141
      %p143 = scmp.ne.s32.totalorder %s129, %s130
      %p144 = scmp.eq.s32.totalorder %s32, 1
      %p145 = por %p143, %p144
      %p147 = scmp.ne.s32.totalorder %s130, %s146
      %p148 = scmp.eq.s32.totalorder %s32, 0
      %p149 = por %p147, %p148
      %s150 = ssub.s32 %s33, %s45
      %s151 = ssub.s32 %s34, %s41
      %s152 = sor.u32 %s150, %s151
      %p153 = scmp.eq.s32.totalorder %s152, 0
      %s155 = sadd.s32 %s154, 1
      %s156 = scalar_select %p153, %s154, %s155
      %p159 = pneg %p153
      %p160 = scmp.eq.s32.totalorder %s26, 1
      %p161 = por %p159, %p160
      %p162 = scmp.ne.s32.totalorder %s154, %s157
      %p163 = scmp.eq.s32.totalorder %s26, 0
      %p164 = por %p162, %p163
      %p165 = scmp.ne.s32.totalorder %s154, %s157
      %p166 = scmp.eq.s32.totalorder %s31, 1
      %p167 = por %p165, %p166
      %p168 = scmp.ne.s32.totalorder %s157, %s158
      %p169 = scmp.eq.s32.totalorder %s31, 0
      %p170 = por %p168, %p169
      %p171 = scmp.ne.s32.totalorder %s157, %s158
      %p172 = scmp.eq.s32.totalorder %s32, 1
      %p173 = por %p171, %p172
      %p175 = scmp.ne.s32.totalorder %s158, %s174
      %p176 = scmp.eq.s32.totalorder %s32, 0
      %p177 = por %p175, %p176
      %s178 = ssub.s32 %s33, %s45
      %s179 = ssub.s32 %s34, %s41
      %s180 = sor.u32 %s178, %s179
      %p181 = scmp.eq.s32.totalorder %s180, 0
      %s183 = sadd.s32 %s182, 1
      %s184 = scalar_select %p181, %s182, %s183
      %p187 = pneg %p181
      %p188 = scmp.eq.s32.totalorder %s26, 1
      %p189 = por %p187, %p188
      %p190 = scmp.ne.s32.totalorder %s182, %s185
      %p191 = scmp.eq.s32.totalorder %s26, 0
      %p192 = por %p190, %p191
      %p193 = scmp.ne.s32.totalorder %s182, %s185
      %p194 = scmp.eq.s32.totalorder %s31, 1
      %p195 = por %p193, %p194
      %p196 = scmp.ne.s32.totalorder %s185, %s186
      %p197 = scmp.eq.s32.totalorder %s31, 0
      %p198 = por %p196, %p197
      %p199 = scmp.ne.s32.totalorder %s185, %s186
      %p200 = scmp.eq.s32.totalorder %s32, 1
      %p201 = por %p199, %p200
      %p203 = scmp.ne.s32.totalorder %s186, %s202
      %p204 = scmp.eq.s32.totalorder %s32, 0
      %p205 = por %p203, %p204
      %s207 = sadd.s32 %s206, 1
      %p210 = scmp.eq.s32.totalorder %s26, 1
      %p211 = scmp.ne.s32.totalorder %s206, %s208
      %p212 = scmp.eq.s32.totalorder %s26, 0
      %p213 = por %p211, %p212
      %p214 = scmp.ne.s32.totalorder %s206, %s208
      %p215 = scmp.eq.s32.totalorder %s31, 1
      %p216 = por %p214, %p215
      %p217 = scmp.ne.s32.totalorder %s208, %s209
      %p218 = scmp.eq.s32.totalorder %s31, 0
      %p219 = por %p217, %p218
      %p220 = scmp.ne.s32.totalorder %s208, %s209
      %p221 = scmp.eq.s32.totalorder %s32, 1
      %p222 = por %p220, %p221
      %p224 = scmp.ne.s32.totalorder %s209, %s223
      %p225 = scmp.eq.s32.totalorder %s32, 0
      %p226 = por %p224, %p225
      %s228 = sadd.s32 %s227, 1
      %p231 = scmp.eq.s32.totalorder %s26, 1
      %p232 = scmp.ne.s32.totalorder %s227, %s229
      %p233 = scmp.eq.s32.totalorder %s26, 0
      %p234 = por %p232, %p233
      %p235 = scmp.ne.s32.totalorder %s227, %s229
      %p236 = scmp.eq.s32.totalorder %s31, 1
      %p237 = por %p235, %p236
      %p238 = scmp.ne.s32.totalorder %s229, %s230
      %p239 = scmp.eq.s32.totalorder %s31, 0
      %p240 = por %p238, %p239
      %p241 = scmp.ne.s32.totalorder %s229, %s230
      %p242 = scmp.eq.s32.totalorder %s32, 1
      %p243 = por %p241, %p242
      %p245 = scmp.ne.s32.totalorder %s230, %s244
      %p246 = scmp.eq.s32.totalorder %s32, 0
      %p247 = por %p245, %p246
      %s249 = sadd.s32 %s248, 1
      %p252 = scmp.eq.s32.totalorder %s26, 1
      %p253 = scmp.ne.s32.totalorder %s248, %s250
      %p254 = scmp.eq.s32.totalorder %s26, 0
      %p255 = por %p253, %p254
      %p256 = scmp.ne.s32.totalorder %s248, %s250
      %p257 = scmp.eq.s32.totalorder %s31, 1
      %p258 = por %p256, %p257
      %p259 = scmp.ne.s32.totalorder %s250, %s251
      %p260 = scmp.eq.s32.totalorder %s31, 0
      %p261 = por %p259, %p260
      %p262 = scmp.ne.s32.totalorder %s250, %s251
      %p263 = scmp.eq.s32.totalorder %s32, 1
      %p264 = por %p262, %p263
      %p266 = scmp.ne.s32.totalorder %s251, %s265
      %p267 = scmp.eq.s32.totalorder %s32, 0
      %p268 = por %p266, %p267
      %s270 = sadd.s32 %s269, 1
      %p273 = scmp.eq.s32.totalorder %s26, 1
      %p274 = scmp.ne.s32.totalorder %s269, %s271
      %p275 = scmp.eq.s32.totalorder %s26, 0
      %p276 = por %p274, %p275
      %p277 = scmp.ne.s32.totalorder %s269, %s271
      %p278 = scmp.eq.s32.totalorder %s31, 1
      %p279 = por %p277, %p278
      %p280 = scmp.ne.s32.totalorder %s271, %s272
      %p281 = scmp.eq.s32.totalorder %s31, 0
      %p282 = por %p280, %p281
      %p283 = scmp.ne.s32.totalorder %s271, %s272
      %p284 = scmp.eq.s32.totalorder %s32, 1
      %p285 = por %p283, %p284
      %p287 = scmp.ne.s32.totalorder %s272, %s286
      %p288 = scmp.eq.s32.totalorder %s32, 0
      %p289 = por %p287, %p288
      %s291 = sadd.s32 %s290, 1
      %p294 = scmp.eq.s32.totalorder %s26, 1
      %p295 = scmp.ne.s32.totalorder %s290, %s292
      %p296 = scmp.eq.s32.totalorder %s26, 0
      %p297 = por %p295, %p296
      %p298 = scmp.ne.s32.totalorder %s290, %s292
      %p299 = scmp.eq.s32.totalorder %s31, 1
      %p300 = por %p298, %p299
      %p301 = scmp.ne.s32.totalorder %s292, %s293
      %p302 = scmp.eq.s32.totalorder %s31, 0
      %p303 = por %p301, %p302
      %p304 = scmp.ne.s32.totalorder %s292, %s293
      %p305 = scmp.eq.s32.totalorder %s32, 1
      %p306 = por %p304, %p305
      %p308 = scmp.ne.s32.totalorder %s293, %s307
      %p309 = scmp.eq.s32.totalorder %s32, 0
      %p310 = por %p308, %p309
      %s311 = ssub.s32 %s33, %s45
      %s312 = ssub.s32 %s34, %s41
      %s313 = sor.u32 %s311, %s312
      %p314 = scmp.eq.s32.totalorder %s313, 0
      %s316 = sadd.s32 %s315, 1
      %s317 = scalar_select %p314, %s315, %s316
      %p320 = pneg %p314
      %p321 = scmp.eq.s32.totalorder %s26, 1
      %p322 = por %p320, %p321
      %p323 = scmp.ne.s32.totalorder %s315, %s318
      %p324 = scmp.eq.s32.totalorder %s26, 0
      %p325 = por %p323, %p324
      %p326 = scmp.ne.s32.totalorder %s315, %s318
      %p327 = scmp.eq.s32.totalorder %s31, 1
      %p328 = por %p326, %p327
      %p329 = scmp.ne.s32.totalorder %s318, %s319
      %p330 = scmp.eq.s32.totalorder %s31, 0
      %p331 = por %p329, %p330
      %p332 = scmp.ne.s32.totalorder %s318, %s319
      %p333 = scmp.eq.s32.totalorder %s32, 1
      %p334 = por %p332, %p333
      %p336 = scmp.ne.s32.totalorder %s319, %s335
      %p337 = scmp.eq.s32.totalorder %s32, 0
      %p338 = por %p336, %p337
      %s339 = ssub.s32 %s33, %s45
      %s340 = ssub.s32 %s34, %s41
      %s341 = sor.u32 %s339, %s340
      %p342 = scmp.eq.s32.totalorder %s341, 0
      %s344 = sadd.s32 %s343, 1
      %s345 = scalar_select %p342, %s343, %s344
      %p348 = pneg %p342
      %p349 = scmp.eq.s32.totalorder %s26, 1
      %p350 = por %p348, %p349
      %p351 = scmp.ne.s32.totalorder %s343, %s346
      %p352 = scmp.eq.s32.totalorder %s26, 0
      %p353 = por %p351, %p352
      %p354 = scmp.ne.s32.totalorder %s343, %s346
      %p355 = scmp.eq.s32.totalorder %s31, 1
      %p356 = por %p354, %p355
      %p357 = scmp.ne.s32.totalorder %s346, %s347
      %p358 = scmp.eq.s32.totalorder %s31, 0
      %p359 = por %p357, %p358
      %p360 = scmp.ne.s32.totalorder %s346, %s347
      %p361 = scmp.eq.s32.totalorder %s32, 1
      %p362 = por %p360, %p361
      %p364 = scmp.ne.s32.totalorder %s347, %s363
      %p365 = scmp.eq.s32.totalorder %s32, 0
      %p366 = por %p364, %p365
      %s367 = ssub.s32 %s33, %s45
      %s368 = ssub.s32 %s34, %s41
      %s369 = sor.u32 %s367, %s368
      %p370 = scmp.eq.s32.totalorder %s369, 0
      %s372 = sadd.s32 %s371, 1
      %s373 = scalar_select %p370, %s371, %s372
      %p376 = pneg %p370
      %p377 = scmp.eq.s32.totalorder %s26, 1
      %p378 = por %p376, %p377
      %p379 = scmp.ne.s32.totalorder %s371, %s374
      %p380 = scmp.eq.s32.totalorder %s26, 0
      %p381 = por %p379, %p380
      %p382 = scmp.ne.s32.totalorder %s371, %s374
      %p383 = scmp.eq.s32.totalorder %s31, 1
      %p384 = por %p382, %p383
      %p385 = scmp.ne.s32.totalorder %s374, %s375
      %p386 = scmp.eq.s32.totalorder %s31, 0
      %p387 = por %p385, %p386
      %p388 = scmp.ne.s32.totalorder %s374, %s375
      %p389 = scmp.eq.s32.totalorder %s32, 1
      %p390 = por %p388, %p389
      %p392 = scmp.ne.s32.totalorder %s375, %s391
      %p393 = scmp.eq.s32.totalorder %s32, 0
      %p394 = por %p392, %p393
      %p395 = scmp.le.s32.totalorder 1, %s26
      %p396 = scmp.lt.s32.totalorder %s26, 3
      %p397 = pnand %p395, %p396
      %p398 = pneg %p397
      // Predicated region
      $region9: #{tpu_custom_call.1} parent=5 // pred_check
        _
      $region10: #{tpu_custom_call.1} parent=5 // pred_check_branch
        %400 = sbr.rel (%p397) target = $region12
      $region11: #{tpu_custom_call.1} parent=5 // pred_region
        %s401 = ssub.s32 %s26, 1
        // Predicated region
        $region13: #{tpu_custom_call.1} parent=11 // pred_check
          %p402 = pneg %p219
        $region14: #{tpu_custom_call.1} parent=11 // pred_check_branch
          %404 = sbr.rel (%p402) target = $region16
        $region15: #{tpu_custom_call.1} parent=11 // pred_region
          _
        $region16: #{tpu_custom_call.1} parent=11 // pred_fallthru
          _
        // Predicated region
        $region17: #{tpu_custom_call.1} parent=11 // pred_check
          %p405 = pneg %p240
        $region18: #{tpu_custom_call.1} parent=11 // pred_check_branch
          %407 = sbr.rel (%p405) target = $region20
        $region19: #{tpu_custom_call.1} parent=11 // pred_region
          _
        $region20: #{tpu_custom_call.1} parent=11 // pred_fallthru
          _
        // Predicated region
        $region21: #{tpu_custom_call.1} parent=11 // pred_check
          %p408 = pneg %p261
        $region22: #{tpu_custom_call.1} parent=11 // pred_check_branch
          %410 = sbr.rel (%p408) target = $region24
        $region23: #{tpu_custom_call.1} parent=11 // pred_region
          _
        $region24: #{tpu_custom_call.1} parent=11 // pred_fallthru
          _
        // Predicated region
        $region25: #{tpu_custom_call.1} parent=11 // pred_check
          %p411 = pneg %p282
        $region26: #{tpu_custom_call.1} parent=11 // pred_check_branch
          %413 = sbr.rel (%p411) target = $region28
        $region27: #{tpu_custom_call.1} parent=11 // pred_region
          _
        $region28: #{tpu_custom_call.1} parent=11 // pred_fallthru
          _
        // Predicated region
        $region29: #{tpu_custom_call.1} parent=11 // pred_check
          %p414 = pneg %p303
        $region30: #{tpu_custom_call.1} parent=11 // pred_check_branch
          %416 = sbr.rel (%p414) target = $region32
        $region31: #{tpu_custom_call.1} parent=11 // pred_region
          _
        $region32: #{tpu_custom_call.1} parent=11 // pred_fallthru
          _
      $region12: #{tpu_custom_call.1} parent=5 // pred_fallthru
        _
      %p417 = scmp.lt.s32.totalorder %s26, 2
      // Predicated region
      $region33: #{tpu_custom_call.1} parent=5 // pred_check
        %p418 = pneg %p417
      $region34: #{tpu_custom_call.1} parent=5 // pred_check_branch
        %420 = sbr.rel (%p418) target = $region36
      $region35: #{tpu_custom_call.1} parent=5 // pred_region
        // Predicated region
        $region37: #{tpu_custom_call.1} parent=35 // pred_check
          %p421 = pneg %p58
        $region38: #{tpu_custom_call.1} parent=35 // pred_check_branch
          %423 = sbr.rel (%p421) target = $region40
        $region39: #{tpu_custom_call.1} parent=35 // pred_region
          %p424 = scmp.lt.s32.totalorder %s33, 1
          %s425 = scalar_select %p424, %s33, 1
          %s426 = smul.addr %s425, 2
          %s427 = scalar_lea.vmem %s0, %s426
        $region40: #{tpu_custom_call.1} parent=35 // pred_fallthru
          _
        // Predicated region
        $region41: #{tpu_custom_call.1} parent=35 // pred_check
          %p428 = pneg %p84
        $region42: #{tpu_custom_call.1} parent=35 // pred_check_branch
          %430 = sbr.rel (%p428) target = $region44
        $region43: #{tpu_custom_call.1} parent=35 // pred_region
          %p431 = scmp.lt.s32.totalorder %s33, 1
          %s432 = scalar_select %p431, %s33, 1
          %s433 = smul.addr %s432, 2
          %s434 = scalar_lea.vmem %s1, %s433
        $region44: #{tpu_custom_call.1} parent=35 // pred_fallthru
          _
        // Predicated region
        $region45: #{tpu_custom_call.1} parent=35 // pred_check
          %p435 = pneg %p110
        $region46: #{tpu_custom_call.1} parent=35 // pred_check_branch
          %437 = sbr.rel (%p435) target = $region48
        $region47: #{tpu_custom_call.1} parent=35 // pred_region
          %p438 = scmp.lt.s32.totalorder %s33, 1
          %s439 = scalar_select %p438, %s33, 1
          %s440 = smul.addr %s439, 2
          %s441 = scalar_lea.vmem %s2, %s440
        $region48: #{tpu_custom_call.1} parent=35 // pred_fallthru
          _
        // Predicated region
        $region49: #{tpu_custom_call.1} parent=35 // pred_check
          %p442 = pneg %p136
        $region50: #{tpu_custom_call.1} parent=35 // pred_check_branch
          %444 = sbr.rel (%p442) target = $region52
        $region51: #{tpu_custom_call.1} parent=35 // pred_region
          %p445 = scmp.lt.s32.totalorder %s33, 1
          %s446 = scalar_select %p445, %s33, 1
          %s447 = smul.addr %s446, 2
          %s448 = scalar_lea.vmem %s3, %s447
        $region52: #{tpu_custom_call.1} parent=35 // pred_fallthru
          _
        // Predicated region
        $region53: #{tpu_custom_call.1} parent=35 // pred_check
          %p449 = pneg %p164
        $region54: #{tpu_custom_call.1} parent=35 // pred_check_branch
          %451 = sbr.rel (%p449) target = $region56
        $region55: #{tpu_custom_call.1} parent=35 // pred_region
          %p452 = scmp.lt.s32.totalorder %s33, 1
          %s453 = scalar_select %p452, %s33, 1
          %p454 = scmp.lt.s32.totalorder %s34, 0
          %s455 = scalar_select %p454, %s34, 0
          %s456 = smul.addr %s455, 2
          %s457 = smul.addr %s453, 2
          %s458 = sadd.s32 %s456, %s457
          %s459 = smul.addr %s458, 4
          %s460 = scalar_lea.vmem %s4, %s459
        $region56: #{tpu_custom_call.1} parent=35 // pred_fallthru
          _
        // Predicated region
        $region57: #{tpu_custom_call.1} parent=35 // pred_check
          %p461 = pneg %p192
        $region58: #{tpu_custom_call.1} parent=35 // pred_check_branch
          %463 = sbr.rel (%p461) target = $region60
        $region59: #{tpu_custom_call.1} parent=35 // pred_region
          %p464 = scmp.lt.s32.totalorder %s33, 1
          %s465 = scalar_select %p464, %s33, 1
          %p466 = scmp.lt.s32.totalorder %s34, 0
          %s467 = scalar_select %p466, %s34, 0
          %s468 = smul.addr %s467, 2
          %s469 = smul.addr %s465, 2
          %s470 = sadd.s32 %s468, %s469
          %s471 = smul.addr %s470, 4
          %s472 = scalar_lea.vmem %s5, %s471
        $region60: #{tpu_custom_call.1} parent=35 // pred_fallthru
          _
      $region36: #{tpu_custom_call.1} parent=5 // pred_fallthru
        _
      %p473 = scmp.le.s32.totalorder 1, %s26
      %p474 = scmp.lt.s32.totalorder %s26, 3
      %p475 = pnand %p473, %p474
      %p476 = pneg %p475
      // Predicated region
      $region61: #{tpu_custom_call.1} parent=5 // pred_check
        _
      $region62: #{tpu_custom_call.1} parent=5 // pred_check_branch
        %478 = sbr.rel (%p475) target = $region64
      $region63: #{tpu_custom_call.1} parent=5 // pred_region
        %s479 = ssub.s32 %s26, 1
        %p480 = scmp.lt.s32.totalorder %s35, 1
        %s481 = scalar_select %p480, %s35, 1
        %s482 = smul.addr %s481, 2
        %s483 = scalar_lea.vmem %s0, %s482
        %p484 = pneg %p64
        %p485 = pneg %p61
        %p486 = scmp.lt.s32.totalorder %s35, 1
        %s487 = scalar_select %p486, %s35, 1
        %s488 = smul.addr %s487, 2
        %s489 = scalar_lea.vmem %s1, %s488
        %p490 = pneg %p90
        %p491 = pneg %p87
        %p492 = scmp.lt.s32.totalorder %s35, 1
        %s493 = scalar_select %p492, %s35, 1
        %s494 = smul.addr %s493, 2
        %s495 = scalar_lea.vmem %s2, %s494
        %p496 = pneg %p116
        %p497 = pneg %p113
        %p498 = scmp.lt.s32.totalorder %s35, 1
        %s499 = scalar_select %p498, %s35, 1
        %s500 = smul.addr %s499, 2
        %s501 = scalar_lea.vmem %s3, %s500
        %p502 = pneg %p142
        %p503 = pneg %p139
        %p504 = scmp.lt.s32.totalorder %s35, 1
        %s505 = scalar_select %p504, %s35, 1
        %p506 = scmp.lt.s32.totalorder %s36, 0
        %s507 = scalar_select %p506, %s36, 0
        %s508 = smul.addr %s507, 2
        %s509 = smul.addr %s505, 2
        %s510 = sadd.s32 %s508, %s509
        %s511 = smul.addr %s510, 4
        %s512 = scalar_lea.vmem %s4, %s511
        %p513 = pneg %p170
        %p514 = pneg %p167
        %p515 = scmp.lt.s32.totalorder %s35, 1
        %s516 = scalar_select %p515, %s35, 1
        %p517 = scmp.lt.s32.totalorder %s36, 0
        %s518 = scalar_select %p517, %s36, 0
        %s519 = smul.addr %s518, 2
        %s520 = smul.addr %s516, 2
        %s521 = sadd.s32 %s519, %s520
        %s522 = smul.addr %s521, 4
        %s523 = scalar_lea.vmem %s5, %s522
        %p524 = pneg %p198
        %p525 = pneg %p195
        %p526 = pneg %p219
        %p527 = pneg %p216
        %p528 = pneg %p240
        %p529 = pneg %p237
        %p530 = pneg %p261
        %p531 = pneg %p258
        %p532 = pneg %p282
        %p533 = pneg %p279
        %p534 = pneg %p303
        %p535 = pneg %p300
        %p536 = pneg %p331
        %p537 = pneg %p328
        %s538 = sand.u32 %s318, 1
        %s539 = scalar_lea.sflag [#allocation3], %s538
        %s540 = sand.u32 %s318, 1
        %s541 = smul.addr %s540, 8
        %s542 = scalar_lea.vmem [#allocation2], %s541
        %p543 = pneg %p359
        %p544 = pneg %p356
        %s545 = sand.u32 %s346, 1
        %s546 = scalar_lea.sflag [#allocation5], %s545
        %s547 = sand.u32 %s346, 1
        %s548 = smul.addr %s547, 8
        %s549 = scalar_lea.vmem [#allocation4], %s548
        %p550 = pneg %p387
        %p551 = pneg %p384
        %p552 = scmp.lt.s32.totalorder %s35, 1
        %s553 = scalar_select %p552, %s35, 1
        %p554 = scmp.lt.s32.totalorder %s36, 0
        %s555 = scalar_select %p554, %s36, 0
        %s556 = sadd.s32 %s555, %s553
        %s557 = smul.addr %s556, 4
        %s558 = scalar_lea.vmem %s13, %s557
        %p559 = scmp.lt.s32.totalorder %s35, 1
        %s560 = scalar_select %p559, %s35, 1
        %s561 = smul.addr %s560, 2
        %s562 = scalar_lea.vmem %s0, %s561
        %p563 = scmp.lt.s32.totalorder %s35, 1
        %s564 = scalar_select %p563, %s35, 1
        %s565 = smul.addr %s564, 2
        %s566 = scalar_lea.vmem %s1, %s565
        %p567 = scmp.lt.s32.totalorder %s35, 1
        %s568 = scalar_select %p567, %s35, 1
        %s569 = smul.addr %s568, 2
        %s570 = scalar_lea.vmem %s2, %s569
        %p571 = scmp.lt.s32.totalorder %s35, 1
        %s572 = scalar_select %p571, %s35, 1
        %s573 = smul.addr %s572, 2
        %s574 = scalar_lea.vmem %s3, %s573
        %p575 = scmp.lt.s32.totalorder %s35, 1
        %s576 = scalar_select %p575, %s35, 1
        %p577 = scmp.lt.s32.totalorder %s36, 0
        %s578 = scalar_select %p577, %s36, 0
        %s579 = smul.addr %s578, 2
        %s580 = smul.addr %s576, 2
        %s581 = sadd.s32 %s579, %s580
        %s582 = smul.addr %s581, 4
        %s583 = scalar_lea.vmem %s4, %s582
        %p584 = scmp.lt.s32.totalorder %s35, 1
        %s585 = scalar_select %p584, %s35, 1
        %p586 = scmp.lt.s32.totalorder %s36, 0
        %s587 = scalar_select %p586, %s36, 0
        %s588 = smul.addr %s587, 2
        %s589 = smul.addr %s585, 2
        %s590 = sadd.s32 %s588, %s589
        %s591 = smul.addr %s590, 4
        %s592 = scalar_lea.vmem %s5, %s591
        %p593 = scmp.lt.s32.totalorder %s35, 1
        %s594 = scalar_select %p593, %s35, 1
        %p595 = scmp.lt.s32.totalorder %s36, 0
        %s596 = scalar_select %p595, %s36, 0
        %s597 = sadd.s32 %s596, %s594
        %s598 = smul.addr %s597, 4
        %s599 = scalar_lea.vmem %s13, %s598
        %v601 = vld [vmem:[%s583] sm:$0xff]
        %v602 = vld [vmem:[%s592] sm:$0xff]
        %v603 = vmul.f32 %v601, %v601
        %v604 = vmul.f32 %v602, %v602
        %v605 = vadd.f32 %v603, %v604
        %v607 = vcombine.high %v605, %v605
        %vm609 = vcmask 1043456
        %v610 = vsel %vm609, %v605, 0.0
        %vm611 = vcmask 27648
        %v612 = vsel %vm611, %v607, 0.0
        %v613 = vadd.f32 %v610, %v612
        %614 = vadd.xlane.f32.xlu0 %v613
        %v615 = vpop.xlane.xlu0 %614
        %v616 = vmul.f32 %v615, -0.5
        %vm617 = vcmask 3072
        %618 = vst.msk [vmem:[%s599] sm:$0xf] %vm617, %v616
        %v619 = vld [vmem:[%s570] sm:$0x3]
        %v621 = vlaneseq
        %v622 = vshrl.u32 %v621, 7
        %v623 = vsub.s32 0, %v622
        %v624 = vrot.slane %v619, %v623
        %v625 = vlaneseq
        %v626 = vshrl.u32 %v625, 7
        %v627 = vsub.s32 1, %v626
        %v628 = vrot.slane %v619, %v627
        %v629 = vcombine.low %v624, %v628
        %v631 = vmul.f32 %v601, %v629
        %v632 = vld [vmem:[%s562] sm:$0x3]
        %v634 = vlaneseq
        %v635 = vshrl.u32 %v634, 7
        %v636 = vsub.s32 0, %v635
        %v637 = vrot.slane %v632, %v636
        %v638 = vlaneseq
        %v639 = vshrl.u32 %v638, 7
        %v640 = vsub.s32 1, %v639
        %v641 = vrot.slane %v632, %v640
        %v642 = vcombine.low %v637, %v641
        %v644 = vadd.f32 %v631, %v642
        %v646 = vcombine.high %v644, %v644
        %v648 = vpack.c.bf16 %v644, %v644
        %v649 = vpack.c.bf16 %v646, %v646
        %v650 = vld [vmem:[%s574] sm:$0x3]
        %v652 = vlaneseq
        %v653 = vshrl.u32 %v652, 7
        %v654 = vsub.s32 0, %v653
        %v655 = vrot.slane %v650, %v654
        %v656 = vlaneseq
        %v657 = vshrl.u32 %v656, 7
        %v658 = vsub.s32 1, %v657
        %v659 = vrot.slane %v650, %v658
        %v660 = vcombine.low %v655, %v659
        %v662 = vmul.f32 %v602, %v660
        %v663 = vld [vmem:[%s566] sm:$0x3]
        %v665 = vlaneseq
        %v666 = vshrl.u32 %v665, 7
        %v667 = vsub.s32 0, %v666
        %v668 = vrot.slane %v663, %v667
        %v669 = vlaneseq
        %v670 = vshrl.u32 %v669, 7
        %v671 = vsub.s32 1, %v670
        %v672 = vrot.slane %v663, %v671
        %v673 = vcombine.low %v668, %v672
        %v675 = vadd.f32 %v662, %v673
        %v677 = vcombine.high %v675, %v675
        %v679 = vpack.c.bf16 %v675, %v675
        %v680 = vpack.c.bf16 %v677, %v677
        %v681 = vld [vmem:[%s6] sm:$0xff]
        %v682 = vld [vmem:[%s6 + $0x8] sm:$0xff]
        %v683 = vld [vmem:[%s6 + $0x10] sm:$0xff]
        %v684 = vld [vmem:[%s6 + $0x18] sm:$0xff]
        %v685 = vld [vmem:[%s6 + $0x20] sm:$0xff]
        %v686 = vld [vmem:[%s6 + $0x28] sm:$0xff]
        %v687 = vld [vmem:[%s6 + $0x30] sm:$0xff]
        %v688 = vld [vmem:[%s6 + $0x38] sm:$0xff]
        %v689 = vld [vmem:[%s6 + $0x40] sm:$0xff]
        %v690 = vld [vmem:[%s6 + $0x48] sm:$0xff]
        %v691 = vld [vmem:[%s6 + $0x50] sm:$0xff]
        %v692 = vld [vmem:[%s6 + $0x58] sm:$0xff]
        %v693 = vld [vmem:[%s6 + $0x60] sm:$0xff]
        %v694 = vld [vmem:[%s6 + $0x68] sm:$0xff]
        %v695 = vld [vmem:[%s6 + $0x70] sm:$0xff]
        %v696 = vld [vmem:[%s6 + $0x78] sm:$0xff]
        %v697 = vld [vmem:[%s6 + $0x80] sm:$0x33]
        %v698 = vld [vmem:[%s7] sm:$0xff]
        %v699 = vld [vmem:[%s7 + $0x8] sm:$0xff]
        %v700 = vld [vmem:[%s7 + $0x10] sm:$0xff]
        %v701 = vld [vmem:[%s7 + $0x18] sm:$0xff]
        %v702 = vld [vmem:[%s7 + $0x20] sm:$0xff]
        %v703 = vld [vmem:[%s7 + $0x28] sm:$0xff]
        %v704 = vld [vmem:[%s7 + $0x30] sm:$0xff]
        %v705 = vld [vmem:[%s7 + $0x38] sm:$0xff]
        %v706 = vld [vmem:[%s7 + $0x40] sm:$0xff]
        %v707 = vld [vmem:[%s7 + $0x48] sm:$0xff]
        %v708 = vld [vmem:[%s7 + $0x50] sm:$0xff]
        %v709 = vld [vmem:[%s7 + $0x58] sm:$0xff]
        %v710 = vld [vmem:[%s7 + $0x60] sm:$0xff]
        %v711 = vld [vmem:[%s7 + $0x68] sm:$0xff]
        %v712 = vld [vmem:[%s7 + $0x70] sm:$0xff]
        %v713 = vld [vmem:[%s7 + $0x78] sm:$0xff]
        %v714 = vld [vmem:[%s7 + $0x80] sm:$0x33]
        %v732 = vunpack.c.l.b16 %v698
        %v733 = vunpack.c.h.b16 %v698
        %v734 = vunpack.c.l.b16 %v699
        %v735 = vunpack.c.h.b16 %v699
        %v736 = vunpack.c.l.b16 %v700
        %v737 = vunpack.c.h.b16 %v700
        %v738 = vunpack.c.l.b16 %v701
        %v739 = vunpack.c.h.b16 %v701
        %v740 = vunpack.c.l.b16 %v702
        %v741 = vunpack.c.h.b16 %v702
        %v742 = vunpack.c.l.b16 %v703
        %v743 = vunpack.c.h.b16 %v703
        %v744 = vunpack.c.l.b16 %v704
        %v745 = vunpack.c.h.b16 %v704
        %v746 = vunpack.c.l.b16 %v705
        %v747 = vunpack.c.h.b16 %v705
        %v748 = vunpack.c.l.b16 %v706
        %v749 = vunpack.c.h.b16 %v706
        %v750 = vunpack.c.l.b16 %v707
        %v751 = vunpack.c.h.b16 %v707
        %v752 = vunpack.c.l.b16 %v708
        %v753 = vunpack.c.h.b16 %v708
        %v754 = vunpack.c.l.b16 %v709
        %v755 = vunpack.c.h.b16 %v709
        %v756 = vunpack.c.l.b16 %v710
        %v757 = vunpack.c.h.b16 %v710
        %v758 = vunpack.c.l.b16 %v711
        %v759 = vunpack.c.h.b16 %v711
        %v760 = vunpack.c.l.b16 %v712
        %v761 = vunpack.c.h.b16 %v712
        %v762 = vunpack.c.l.b16 %v713
        %v763 = vunpack.c.h.b16 %v713
        %v764 = vunpack.c.l.b16 %v714
        %v765 = vunpack.c.h.b16 %v714
        %v766 = vpack.c.b16 %v734, %v732
        %v767 = vpack.c.b16 %v735, %v733
        %v768 = vpack.c.b16 %v738, %v736
        %v769 = vpack.c.b16 %v739, %v737
        %v770 = vpack.c.b16 %v742, %v740
        %v771 = vpack.c.b16 %v743, %v741
        %v772 = vpack.c.b16 %v746, %v744
        %v773 = vpack.c.b16 %v747, %v745
        %v774 = vpack.c.b16 %v750, %v748
        %v775 = vpack.c.b16 %v751, %v749
        %v776 = vpack.c.b16 %v754, %v752
        %v777 = vpack.c.b16 %v755, %v753
        %v778 = vpack.c.b16 %v758, %v756
        %v779 = vpack.c.b16 %v759, %v757
        %v780 = vpack.c.b16 %v762, %v760
        %v781 = vpack.c.b16 %v763, %v761
        %v782 = vpack.c.b16 %v764, %v764
        %v783 = vpack.c.b16 %v765, %v765
        %vm800 = vcmask 31744
        %v802 = vsel %vm800, %v680, 0
        %vm804 = vcmask 1041408
        %v806 = vsel %vm804, %v782, 0
        %v809 = vsel %vm804, %v783, 0
        %811 = vmatprep.subr.bf16.mxu0 %v781
        %812 = vmatpush1.bf16.msra.mxu0 %v780
        %813 = vmatprep.subr.bf16.mxu0 %v779
        %814 = vmatpush1.bf16.msra.mxu0 %v778
        %815 = vmatprep.subr.bf16.mxu0 %v777
        %816 = vmatpush1.bf16.msra.mxu0 %v776
        %817 = vmatprep.subr.bf16.mxu0 %v775
        %818 = vmatpush1.bf16.msra.mxu0 %v774
        %819 = vmatprep.subr.bf16.mxu0 %v773
        %820 = vmatpush1.bf16.msra.mxu0 %v772
        %821 = vmatprep.subr.bf16.mxu0 %v771
        %822 = vmatpush1.bf16.msra.mxu0 %v770
        %823 = vmatprep.subr.bf16.mxu0 %v769
        %824 = vmatpush1.bf16.msra.mxu0 %v768
        %825 = vmatprep.subr.bf16.mxu0 %v767
        %826 = vmatpush1.bf16.msra.mxu0 %v766
        %827 = vmatprep.subr.bf16.mxu0 0
        %828 = vmatpush2.bf16.msra.mxu0 0
        %829 = vmatprep.subr.bf16.mxu0 0
        %830 = vmatpush2.bf16.msra.mxu0 0
        %831 = vmatprep.subr.bf16.mxu0 0
        %832 = vmatpush2.bf16.msra.mxu0 0
        %833 = vmatprep.subr.bf16.mxu0 0
        %834 = vmatpush2.bf16.msra.mxu0 0
        %835 = vmatprep.subr.bf16.mxu0 0
        %836 = vmatpush2.bf16.msra.mxu0 0
        %837 = vmatprep.subr.bf16.mxu0 0
        %838 = vmatpush2.bf16.msra.mxu0 0
        %839 = vmatprep.subr.bf16.mxu0 0
        %840 = vmatpush2.bf16.msra.mxu0 0
        %841 = vmatprep.subr.bf16.mxu0 %v809
        %842 = vmatpush2.bf16.msra.mxu0 %v806
        %843 = vmatprep.mubr.bf16.mxu0 %v802
        %844 = vmatmul.mubr.bf16.gmra.mxu0 %v679
        %v845 = vpop.f32.mrf.mxu0
        %v846 = vadd.f32 0.0, %v845
        %v847 = vpop.f32.mrf.mxu0
        %v848 = vadd.f32 0.0, %v847
        %v849 = vpop.f32.mrf.mxu0
        %v850 = vpop.f32.mrf.mxu0
        %851 = vdwg.mxu0
        %v869 = vunpack.c.l.b16 %v681
        %v870 = vunpack.c.h.b16 %v681
        %v871 = vunpack.c.l.b16 %v682
        %v872 = vunpack.c.h.b16 %v682
        %v873 = vunpack.c.l.b16 %v683
        %v874 = vunpack.c.h.b16 %v683
        %v875 = vunpack.c.l.b16 %v684
        %v876 = vunpack.c.h.b16 %v684
        %v877 = vunpack.c.l.b16 %v685
        %v878 = vunpack.c.h.b16 %v685
        %v879 = vunpack.c.l.b16 %v686
        %v880 = vunpack.c.h.b16 %v686
        %v881 = vunpack.c.l.b16 %v687
        %v882 = vunpack.c.h.b16 %v687
        %v883 = vunpack.c.l.b16 %v688
        %v884 = vunpack.c.h.b16 %v688
        %v885 = vunpack.c.l.b16 %v689
        %v886 = vunpack.c.h.b16 %v689
        %v887 = vunpack.c.l.b16 %v690
        %v888 = vunpack.c.h.b16 %v690
        %v889 = vunpack.c.l.b16 %v691
        %v890 = vunpack.c.h.b16 %v691
        %v891 = vunpack.c.l.b16 %v692
        %v892 = vunpack.c.h.b16 %v692
        %v893 = vunpack.c.l.b16 %v693
        %v894 = vunpack.c.h.b16 %v693
        %v895 = vunpack.c.l.b16 %v694
        %v896 = vunpack.c.h.b16 %v694
        %v897 = vunpack.c.l.b16 %v695
        %v898 = vunpack.c.h.b16 %v695
        %v899 = vunpack.c.l.b16 %v696
        %v900 = vunpack.c.h.b16 %v696
        %v901 = vunpack.c.l.b16 %v697
        %v902 = vunpack.c.h.b16 %v697
        %v903 = vpack.c.b16 %v871, %v869
        %v904 = vpack.c.b16 %v872, %v870
        %v905 = vpack.c.b16 %v875, %v873
        %v906 = vpack.c.b16 %v876, %v874
        %v907 = vpack.c.b16 %v879, %v877
        %v908 = vpack.c.b16 %v880, %v878
        %v909 = vpack.c.b16 %v883, %v881
        %v910 = vpack.c.b16 %v884, %v882
        %v911 = vpack.c.b16 %v887, %v885
        %v912 = vpack.c.b16 %v888, %v886
        %v913 = vpack.c.b16 %v891, %v889
        %v914 = vpack.c.b16 %v892, %v890
        %v915 = vpack.c.b16 %v895, %v893
        %v916 = vpack.c.b16 %v896, %v894
        %v917 = vpack.c.b16 %v899, %v897
        %v918 = vpack.c.b16 %v900, %v898
        %v919 = vpack.c.b16 %v901, %v901
        %v920 = vpack.c.b16 %v902, %v902
        %v938 = vsel %vm800, %v649, 0
        %v941 = vsel %vm804, %v919, 0
        %v944 = vsel %vm804, %v920, 0
        %946 = vmatprep.subr.bf16.mxu0 %v918
        %947 = vmatpush1.bf16.msra.mxu0 %v917
        %948 = vmatprep.subr.bf16.mxu0 %v916
        %949 = vmatpush1.bf16.msra.mxu0 %v915
        %950 = vmatprep.subr.bf16.mxu0 %v914
        %951 = vmatpush1.bf16.msra.mxu0 %v913
        %952 = vmatprep.subr.bf16.mxu0 %v912
        %953 = vmatpush1.bf16.msra.mxu0 %v911
        %954 = vmatprep.subr.bf16.mxu0 %v910
        %955 = vmatpush1.bf16.msra.mxu0 %v909
        %956 = vmatprep.subr.bf16.mxu0 %v908
        %957 = vmatpush1.bf16.msra.mxu0 %v907
        %958 = vmatprep.subr.bf16.mxu0 %v906
        %959 = vmatpush1.bf16.msra.mxu0 %v905
        %960 = vmatprep.subr.bf16.mxu0 %v904
        %961 = vmatpush1.bf16.msra.mxu0 %v903
        %962 = vmatprep.subr.bf16.mxu0 0
        %963 = vmatpush2.bf16.msra.mxu0 0
        %964 = vmatprep.subr.bf16.mxu0 0
        %965 = vmatpush2.bf16.msra.mxu0 0
        %966 = vmatprep.subr.bf16.mxu0 0
        %967 = vmatpush2.bf16.msra.mxu0 0
        %968 = vmatprep.subr.bf16.mxu0 0
        %969 = vmatpush2.bf16.msra.mxu0 0
        %970 = vmatprep.subr.bf16.mxu0 0
        %971 = vmatpush2.bf16.msra.mxu0 0
        %972 = vmatprep.subr.bf16.mxu0 0
        %973 = vmatpush2.bf16.msra.mxu0 0
        %974 = vmatprep.subr.bf16.mxu0 0
        %975 = vmatpush2.bf16.msra.mxu0 0
        %976 = vmatprep.subr.bf16.mxu0 %v944
        %977 = vmatpush2.bf16.msra.mxu0 %v941
        %978 = vmatprep.mubr.bf16.mxu0 %v938
        %979 = vmatmul.mubr.bf16.gmra.mxu0 %v648
        %v980 = vpop.f32.mrf.mxu0
        %v981 = vadd.f32 %v846, %v980
        %v982 = vpop.f32.mrf.mxu0
        %v983 = vadd.f32 %v848, %v982
        %v984 = vpop.f32.mrf.mxu0
        %v985 = vpop.f32.mrf.mxu0
        %986 = vdwg.mxu0
        %v987 = vld [vmem:[%s8] sm:$0x3]
        %v989 = vlaneseq
        %v990 = vshrl.u32 %v989, 7
        %v991 = vsub.s32 0, %v990
        %v992 = vrot.slane %v987, %v991
        %v993 = vlaneseq
        %v994 = vshrl.u32 %v993, 7
        %v995 = vsub.s32 1, %v994
        %v996 = vrot.slane %v987, %v995
        %v999 = vadd.f32 %v981, %v992
        %v1000 = vadd.f32 %v983, %v996
        %v1001 = vmax.f32 %v999, 0.0
        %v1002 = vmax.f32 %v1000, 0.0
        %v1003 = vpack.c.bf16 %v1001, %v1001
        %v1004 = vpack.c.bf16 %v1002, %v1002
        %v1005 = vld [vmem:[%s9] sm:$0xff]
        %v1006 = vld [vmem:[%s9 + $0x8] sm:$0xff]
        %v1007 = vld [vmem:[%s9 + $0x10] sm:$0xff]
        %v1008 = vld [vmem:[%s9 + $0x18] sm:$0xff]
        %v1009 = vld [vmem:[%s9 + $0x20] sm:$0xff]
        %v1010 = vld [vmem:[%s9 + $0x28] sm:$0xff]
        %v1011 = vld [vmem:[%s9 + $0x30] sm:$0xff]
        %v1012 = vld [vmem:[%s9 + $0x38] sm:$0xff]
        %v1013 = vld [vmem:[%s9 + $0x40] sm:$0xff]
        %v1014 = vld [vmem:[%s9 + $0x48] sm:$0xff]
        %v1015 = vld [vmem:[%s9 + $0x50] sm:$0xff]
        %v1016 = vld [vmem:[%s9 + $0x58] sm:$0xff]
        %v1017 = vld [vmem:[%s9 + $0x60] sm:$0xff]
        %v1018 = vld [vmem:[%s9 + $0x68] sm:$0xff]
        %v1019 = vld [vmem:[%s9 + $0x70] sm:$0xff]
        %v1020 = vld [vmem:[%s9 + $0x78] sm:$0xff]
        %v1021 = vld [vmem:[%s9 + $0x80] sm:$0xff]
        %v1022 = vld [vmem:[%s9 + $0x88] sm:$0xff]
        %v1023 = vld [vmem:[%s9 + $0x90] sm:$0xff]
        %v1024 = vld [vmem:[%s9 + $0x98] sm:$0xff]
        %v1025 = vld [vmem:[%s9 + $0xa0] sm:$0xff]
        %v1026 = vld [vmem:[%s9 + $0xa8] sm:$0xff]
        %v1027 = vld [vmem:[%s9 + $0xb0] sm:$0xff]
        %v1028 = vld [vmem:[%s9 + $0xb8] sm:$0xff]
        %v1029 = vld [vmem:[%s9 + $0xc0] sm:$0xff]
        %v1030 = vld [vmem:[%s9 + $0xc8] sm:$0xff]
        %v1031 = vld [vmem:[%s9 + $0xd0] sm:$0xff]
        %v1032 = vld [vmem:[%s9 + $0xd8] sm:$0xff]
        %v1033 = vld [vmem:[%s9 + $0xe0] sm:$0xff]
        %v1034 = vld [vmem:[%s9 + $0xe8] sm:$0xff]
        %v1035 = vld [vmem:[%s9 + $0xf0] sm:$0xff]
        %v1036 = vld [vmem:[%s9 + $0xf8] sm:$0xff]
        %v1037 = vld [vmem:[%s10] sm:$0x3]
        %v1039 = vlaneseq
        %v1040 = vshrl.u32 %v1039, 7
        %v1041 = vsub.s32 0, %v1040
        %v1042 = vrot.slane %v1037, %v1041
        %v1043 = vlaneseq
        %v1044 = vshrl.u32 %v1043, 7
        %v1045 = vsub.s32 1, %v1044
        %v1046 = vrot.slane %v1037, %v1045
        %v1081 = vunpack.c.l.b16 %v1005
        %v1082 = vunpack.c.h.b16 %v1005
        %v1083 = vunpack.c.l.b16 %v1006
        %v1084 = vunpack.c.h.b16 %v1006
        %v1085 = vunpack.c.l.b16 %v1007
        %v1086 = vunpack.c.h.b16 %v1007
        %v1087 = vunpack.c.l.b16 %v1008
        %v1088 = vunpack.c.h.b16 %v1008
        %v1089 = vunpack.c.l.b16 %v1009
        %v1090 = vunpack.c.h.b16 %v1009
        %v1091 = vunpack.c.l.b16 %v1010
        %v1092 = vunpack.c.h.b16 %v1010
        %v1093 = vunpack.c.l.b16 %v1011
        %v1094 = vunpack.c.h.b16 %v1011
        %v1095 = vunpack.c.l.b16 %v1012
        %v1096 = vunpack.c.h.b16 %v1012
        %v1097 = vunpack.c.l.b16 %v1013
        %v1098 = vunpack.c.h.b16 %v1013
        %v1099 = vunpack.c.l.b16 %v1014
        %v1100 = vunpack.c.h.b16 %v1014
        %v1101 = vunpack.c.l.b16 %v1015
        %v1102 = vunpack.c.h.b16 %v1015
        %v1103 = vunpack.c.l.b16 %v1016
        %v1104 = vunpack.c.h.b16 %v1016
        %v1105 = vunpack.c.l.b16 %v1017
        %v1106 = vunpack.c.h.b16 %v1017
        %v1107 = vunpack.c.l.b16 %v1018
        %v1108 = vunpack.c.h.b16 %v1018
        %v1109 = vunpack.c.l.b16 %v1019
        %v1110 = vunpack.c.h.b16 %v1019
        %v1111 = vunpack.c.l.b16 %v1020
        %v1112 = vunpack.c.h.b16 %v1020
        %v1113 = vunpack.c.l.b16 %v1021
        %v1114 = vunpack.c.h.b16 %v1021
        %v1115 = vunpack.c.l.b16 %v1022
        %v1116 = vunpack.c.h.b16 %v1022
        %v1117 = vunpack.c.l.b16 %v1023
        %v1118 = vunpack.c.h.b16 %v1023
        %v1119 = vunpack.c.l.b16 %v1024
        %v1120 = vunpack.c.h.b16 %v1024
        %v1121 = vunpack.c.l.b16 %v1025
        %v1122 = vunpack.c.h.b16 %v1025
        %v1123 = vunpack.c.l.b16 %v1026
        %v1124 = vunpack.c.h.b16 %v1026
        %v1125 = vunpack.c.l.b16 %v1027
        %v1126 = vunpack.c.h.b16 %v1027
        %v1127 = vunpack.c.l.b16 %v1028
        %v1128 = vunpack.c.h.b16 %v1028
        %v1129 = vunpack.c.l.b16 %v1029
        %v1130 = vunpack.c.h.b16 %v1029
        %v1131 = vunpack.c.l.b16 %v1030
        %v1132 = vunpack.c.h.b16 %v1030
        %v1133 = vunpack.c.l.b16 %v1031
        %v1134 = vunpack.c.h.b16 %v1031
        %v1135 = vunpack.c.l.b16 %v1032
        %v1136 = vunpack.c.h.b16 %v1032
        %v1137 = vunpack.c.l.b16 %v1033
        %v1138 = vunpack.c.h.b16 %v1033
        %v1139 = vunpack.c.l.b16 %v1034
        %v1140 = vunpack.c.h.b16 %v1034
        %v1141 = vunpack.c.l.b16 %v1035
        %v1142 = vunpack.c.h.b16 %v1035
        %v1143 = vunpack.c.l.b16 %v1036
        %v1144 = vunpack.c.h.b16 %v1036
        %v1145 = vpack.c.b16 %v1083, %v1081
        %v1146 = vpack.c.b16 %v1084, %v1082
        %v1147 = vpack.c.b16 %v1087, %v1085
        %v1148 = vpack.c.b16 %v1088, %v1086
        %v1149 = vpack.c.b16 %v1091, %v1089
        %v1150 = vpack.c.b16 %v1092, %v1090
        %v1151 = vpack.c.b16 %v1095, %v1093
        %v1152 = vpack.c.b16 %v1096, %v1094
        %v1153 = vpack.c.b16 %v1099, %v1097
        %v1154 = vpack.c.b16 %v1100, %v1098
        %v1155 = vpack.c.b16 %v1103, %v1101
        %v1156 = vpack.c.b16 %v1104, %v1102
        %v1157 = vpack.c.b16 %v1107, %v1105
        %v1158 = vpack.c.b16 %v1108, %v1106
        %v1159 = vpack.c.b16 %v1111, %v1109
        %v1160 = vpack.c.b16 %v1112, %v1110
        %v1161 = vpack.c.b16 %v1115, %v1113
        %v1162 = vpack.c.b16 %v1116, %v1114
        %v1163 = vpack.c.b16 %v1119, %v1117
        %v1164 = vpack.c.b16 %v1120, %v1118
        %v1165 = vpack.c.b16 %v1123, %v1121
        %v1166 = vpack.c.b16 %v1124, %v1122
        %v1167 = vpack.c.b16 %v1127, %v1125
        %v1168 = vpack.c.b16 %v1128, %v1126
        %v1169 = vpack.c.b16 %v1131, %v1129
        %v1170 = vpack.c.b16 %v1132, %v1130
        %v1171 = vpack.c.b16 %v1135, %v1133
        %v1172 = vpack.c.b16 %v1136, %v1134
        %v1173 = vpack.c.b16 %v1139, %v1137
        %v1174 = vpack.c.b16 %v1140, %v1138
        %v1175 = vpack.c.b16 %v1143, %v1141
        %v1176 = vpack.c.b16 %v1144, %v1142
        %1209 = vmatprep.subr.bf16.mxu0 %v1160
        %1210 = vmatpush1.bf16.msra.mxu0 %v1159
        %1211 = vmatprep.subr.bf16.mxu0 %v1158
        %1212 = vmatpush1.bf16.msra.mxu0 %v1157
        %1213 = vmatprep.subr.bf16.mxu0 %v1156
        %1214 = vmatpush1.bf16.msra.mxu0 %v1155
        %1215 = vmatprep.subr.bf16.mxu0 %v1154
        %1216 = vmatpush1.bf16.msra.mxu0 %v1153
        %1217 = vmatprep.subr.bf16.mxu0 %v1152
        %1218 = vmatpush1.bf16.msra.mxu0 %v1151
        %1219 = vmatprep.subr.bf16.mxu0 %v1150
        %1220 = vmatpush1.bf16.msra.mxu0 %v1149
        %1221 = vmatprep.subr.bf16.mxu0 %v1148
        %1222 = vmatpush1.bf16.msra.mxu0 %v1147
        %1223 = vmatprep.subr.bf16.mxu0 %v1146
        %1224 = vmatpush1.bf16.msra.mxu0 %v1145
        %1225 = vmatprep.subr.bf16.mxu0 %v1176
        %1226 = vmatpush2.bf16.msra.mxu0 %v1175
        %1227 = vmatprep.subr.bf16.mxu0 %v1174
        %1228 = vmatpush2.bf16.msra.mxu0 %v1173
        %1229 = vmatprep.subr.bf16.mxu0 %v1172
        %1230 = vmatpush2.bf16.msra.mxu0 %v1171
        %1231 = vmatprep.subr.bf16.mxu0 %v1170
        %1232 = vmatpush2.bf16.msra.mxu0 %v1169
        %1233 = vmatprep.subr.bf16.mxu0 %v1168
        %1234 = vmatpush2.bf16.msra.mxu0 %v1167
        %1235 = vmatprep.subr.bf16.mxu0 %v1166
        %1236 = vmatpush2.bf16.msra.mxu0 %v1165
        %1237 = vmatprep.subr.bf16.mxu0 %v1164
        %1238 = vmatpush2.bf16.msra.mxu0 %v1163
        %1239 = vmatprep.subr.bf16.mxu0 %v1162
        %1240 = vmatpush2.bf16.msra.mxu0 %v1161
        %1241 = vmatprep.mubr.bf16.mxu0 %v1004
        %1242 = vmatmul.mubr.bf16.gmra.mxu0 %v1003
        %v1243 = vpop.f32.mrf.mxu0
        %v1244 = vadd.f32 %v1042, %v1243
        %v1245 = vpop.f32.mrf.mxu0
        %v1246 = vadd.f32 %v1046, %v1245
        %v1247 = vpop.f32.mrf.mxu0
        %v1248 = vpop.f32.mrf.mxu0
        %1249 = vdwg.mxu0
        %v1252 = vcombine.low %v1244, %v1246
        %vm1254 = vcmask 31748
        %vm1255 = vmor %vm1254, %vm609
        %1256 = vst.msk [vmem:[%s542] sm:$0xff] %vm1255, %v1252
        %v1257 = vld [vmem:[%s542] sm:$0xff]
        %v1258 = vmul.f32 %v1257, %v1257
        %1260 = vrot.lane.b32.xlu0 %v1258, 106
        %v1261 = vpop.permute.xlu0 %1260
        %v1263 = vadd.f32 %v1258, %v1261
        %1264 = vrot.lane.b32.xlu0 %v1258, 84
        %v1265 = vpop.permute.xlu0 %1264
        %v1267 = vadd.f32 %v1263, %v1265
        %v1268 = vmax.f32 %v1267, 1e-24
        %v1269 = vrsqrt.pop %v1268
        %v1270 = vmul.f32 %v1257, %v1269
        %1272 = vrot.lane.b32.xlu0 %v1269, 22
        %v1273 = vpop.permute.xlu0 %1272
        %v1275 = vmul.f32 %v1257, %v1273
        %1276 = vrot.lane.b32.xlu0 %v1269, 44
        %v1277 = vpop.permute.xlu0 %1276
        %v1279 = vmul.f32 %v1257, %v1277
        %1281 = vrot.lane.b32.xlu0 %v1257, 62
        %v1282 = vpop.permute.xlu0 %1281
        %v1284 = vmul.f32 %v1270, %v1282
        %v1285 = vmul.f32 %v1275, %v1282
        %1287 = vrot.lane.b32.xlu0 %v1285, 106
        %v1288 = vpop.permute.xlu0 %1287
        %v1290 = vadd.f32 %v1284, %v1288
        %v1291 = vrot.slane %v1282, 4
        %vm1292 = vcmask 506880
        %v1293 = vsel %vm1292, %v1282, %v1291
        %v1295 = vmul.f32 %v1279, %v1293
        %1297 = vrot.lane.b32.xlu0 %v1295, 84
        %v1298 = vpop.permute.xlu0 %1297
        %v1300 = vadd.f32 %v1290, %v1298
        %v1301 = vmul.f32 %v1300, %v1270
        %1303 = vrot.lane.b32.xlu0 %v1301, 66
        %v1304 = vpop.permute.xlu0 %1303
        %v1306 = vsub.f32 %v1257, %v1304
        %1308 = vrot.lane.b32.xlu0 %v1275, 106
        %v1309 = vpop.permute.xlu0 %1308
        %v1311 = vmul.f32 %v1300, %v1309
        %1313 = vrot.lane.b32.xlu0 %v1311, 88
        %v1314 = vpop.permute.xlu0 %1313
        %v1316 = vsub.f32 %v1257, %v1314
        %1318 = vrot.lane.b32.xlu0 %v1279, 84
        %v1319 = vpop.permute.xlu0 %1318
        %v1321 = vmul.f32 %v1300, %v1319
        %1323 = vrot.lane.b32.xlu0 %v1321, 110
        %v1324 = vpop.permute.xlu0 %1323
        %v1325 = vrot.slane %v1324, 4
        %vm1326 = vcmask 900096
        %v1327 = vsel %vm1326, %v1325, %v1324
        %v1329 = vsub.f32 %v1257, %v1327
        %v1330 = vmul.f32 %v1306, %v1306
        %v1331 = vmul.f32 %v1316, %v1316
        %1333 = vrot.lane.b32.xlu0 %v1331, 106
        %v1334 = vpop.permute.xlu0 %1333
        %v1336 = vadd.f32 %v1330, %v1334
        %v1337 = vmul.f32 %v1329, %v1329
        %1339 = vrot.lane.b32.xlu0 %v1337, 84
        %v1340 = vpop.permute.xlu0 %1339
        %v1341 = vrot.slane %v1340, 4
        %vm1342 = vcmask 687104
        %v1343 = vsel %vm1342, %v1340, %v1341
        %v1345 = vadd.f32 %v1336, %v1343
        %v1346 = vmax.f32 %v1345, 1e-24
        %v1347 = vrsqrt.pop %v1346
        %v1348 = vmul.f32 %v1306, %v1347
        %1350 = vrot.lane.b32.xlu0 %v1347, 22
        %v1351 = vpop.permute.xlu0 %1350
        %v1353 = vmul.f32 %v1316, %v1351
        %1354 = vrot.lane.b32.xlu0 %v1347, 44
        %v1355 = vpop.permute.xlu0 %1354
        %v1356 = vrot.slane %v1355, 4
        %vm1357 = vcmask 359424
        %v1358 = vsel %vm1357, %v1356, %v1355
        %v1360 = vmul.f32 %v1329, %v1358
        %1362 = vrot.lane.b32.xlu0 %v1360, 40
        %v1363 = vpop.permute.xlu0 %1362
        %v1364 = vrot.slane %v1363, 4
        %vm1365 = vcmask 326656
        %v1366 = vsel %vm1365, %v1363, %v1364
        %v1368 = vmul.f32 %v1275, %v1366
        %1370 = vrot.lane.b32.xlu0 %v1353, 84
        %v1371 = vpop.permute.xlu0 %1370
        %v1373 = vmul.f32 %v1279, %v1371
        %1375 = vrot.lane.b32.xlu0 %v1373, 106
        %v1376 = vpop.permute.xlu0 %1375
        %v1378 = vsub.f32 %v1368, %v1376
        %1380 = vrot.lane.b32.xlu0 %v1348, 106
        %v1381 = vpop.permute.xlu0 %1380
        %v1383 = vmul.f32 %v1279, %v1381
        %1384 = vrot.lane.b32.xlu0 %v1360, 18
        %v1385 = vpop.permute.xlu0 %1384
        %v1386 = vrot.slane %v1385, 4
        %vm1387 = vcmask 146432
        %v1388 = vsel %vm1387, %v1385, %v1386
        %v1390 = vmul.f32 %v1270, %v1388
        %1392 = vrot.lane.b32.xlu0 %v1390, 44
        %v1393 = vpop.permute.xlu0 %1392
        %v1395 = vsub.f32 %v1383, %v1393
        %1396 = vrot.lane.b32.xlu0 %v1353, 40
        %v1397 = vpop.permute.xlu0 %1396
        %v1399 = vmul.f32 %v1270, %v1397
        %1400 = vrot.lane.b32.xlu0 %v1348, 84
        %v1401 = vpop.permute.xlu0 %1400
        %v1403 = vmul.f32 %v1275, %v1401
        %1405 = vrot.lane.b32.xlu0 %v1403, 106
        %v1406 = vpop.permute.xlu0 %1405
        %v1408 = vsub.f32 %v1399, %v1406
        %1410 = vrot.lane.b32.xlu0 %v1378, 22
        %v1411 = vpop.permute.xlu0 %1410
        %1413 = vrot.lane.b32.xlu0 %v1275, 44
        %v1414 = vpop.permute.xlu0 %1413
        %1417 = vrot.lane.b32.xlu0 %v1395, 66
        %v1418 = vpop.permute.xlu0 %1417
        %1420 = vrot.lane.b32.xlu0 %v1279, 88
        %v1421 = vpop.permute.xlu0 %1420
        %v1423 = vcombine.high %v1360, %v1360
        %1424 = vrot.lane.b32.xlu0 %v1360, 44
        %v1425 = vpop.permute.xlu0 %1424
        %1426 = vrot.lane.b32.xlu0 %v1423, 44
        %v1427 = vpop.permute.xlu0 %1426
        %v1428 = vsel %vm1357, %v1425, %v1427
        %1431 = vrot.lane.b32.xlu0 %v1408, 48
        %v1432 = vpop.permute.xlu0 %1431
        %vm1434 = vcmask 179200
        %v1435 = vsel %vm1434, %v1270, %v1401
        %v1436 = vsel %vm1357, %v1435, %v1411
        %vm1437 = vcmask 539648
        %v1438 = vsel %vm1437, %v1436, %v1414
        %vm1439 = vcmask 719872
        %v1440 = vsel %vm1439, %v1438, %v1353
        %v1441 = vsel %vm1326, %v1440, %v1418
        %v1442 = vsel %vm800, %v1418, %v1421
        %vm1443 = vcmask 211968
        %v1444 = vsel %vm1443, %v1442, %v1428
        %vm1445 = vcmask 392192
        %v1446 = vsel %vm1445, %v1444, %v1432
        %v1449 = vcombine.low %v1441, %v1446
        %vm1451 = vcmask 572420
        %vm1452 = vmor %vm1451, %vm609
        %1453 = vst.msk [vmem:[%s549] sm:$0xff] %vm1452, %v1449
        %s1454 = sand.u32 %s318, 1
        %s1455 = scalar_lea.sflag [#allocation3], %s1454
        %s1456 = sand.u32 %s318, 1
        %s1457 = smul.addr %s1456, 8
        %s1458 = scalar_lea.vmem [#allocation2], %s1457
        %s1459 = sand.u32 %s346, 1
        %s1460 = scalar_lea.sflag [#allocation5], %s1459
        %s1461 = sand.u32 %s346, 1
        %s1462 = smul.addr %s1461, 8
        %s1463 = scalar_lea.vmem [#allocation4], %s1462
        %p1464 = scmp.lt.s32.totalorder %s35, 1
        %s1465 = scalar_select %p1464, %s35, 1
        %p1466 = scmp.lt.s32.totalorder %s36, 0
        %s1467 = scalar_select %p1466, %s36, 0
        %s1468 = sadd.s32 %s1467, %s1465
        %s1469 = smul.addr %s1468, 4
        %s1470 = scalar_lea.vmem %s13, %s1469
        // Predicated region
        $region65: #{tpu_custom_call.1} parent=63 // pred_check
          %p1471 = pneg %p328
        $region66: #{tpu_custom_call.1} parent=63 // pred_check_branch
          %1473 = sbr.rel (%p1471) target = $region68
        $region67: #{tpu_custom_call.1} parent=63 // pred_region
          %s1475 = ssub.s32 128, 128
          %1476 = vsyncadd %s1455, %s1475
          %s1477 = smul.addr %s36, 2
          %s1478 = smul.addr %s35, 2
          %s1479 = sadd.s32 %s1477, %s1478
          %s1480 = smul.addr %s1479, 64
          %s1481 = scalar_lea.hbm %s11, %s1480
          %s1483 = sshll.u32 %s1458, 4
          %s1484 = int_to_ptr.vmem [resolvable:$true] %s1483
          %1486 = dma.vmem_to_hbm [thread:$0]  %s1484, 128, %s1481, %s1455
        $region68: #{tpu_custom_call.1} parent=63 // pred_fallthru
          _
        // Predicated region
        $region69: #{tpu_custom_call.1} parent=63 // pred_check
          %p1487 = pneg %p356
        $region70: #{tpu_custom_call.1} parent=63 // pred_check_branch
          %1489 = sbr.rel (%p1487) target = $region72
        $region71: #{tpu_custom_call.1} parent=63 // pred_region
          %s1491 = ssub.s32 128, 128
          %1492 = vsyncadd %s1460, %s1491
          %s1493 = smul.addr %s36, 2
          %s1494 = smul.addr %s35, 2
          %s1495 = sadd.s32 %s1493, %s1494
          %s1496 = smul.addr %s1495, 64
          %s1497 = scalar_lea.hbm %s12, %s1496
          %s1499 = sshll.u32 %s1463, 4
          %s1500 = int_to_ptr.vmem [resolvable:$true] %s1499
          %1502 = dma.vmem_to_hbm [thread:$0]  %s1500, 128, %s1497, %s1460
        $region72: #{tpu_custom_call.1} parent=63 // pred_fallthru
          _
        // Predicated region
        $region73: #{tpu_custom_call.1} parent=63 // pred_check
          %p1503 = pneg %p384
        $region74: #{tpu_custom_call.1} parent=63 // pred_check_branch
          %1505 = sbr.rel (%p1503) target = $region76
        $region75: #{tpu_custom_call.1} parent=63 // pred_region
          _
        $region76: #{tpu_custom_call.1} parent=63 // pred_fallthru
          _
      $region64: #{tpu_custom_call.1} parent=5 // pred_fallthru
        _
      %p1506 = scmp.le.s32.totalorder 2, %s26
      // Predicated region
      $region77: #{tpu_custom_call.1} parent=5 // pred_check
        %p1507 = pneg %p1506
      $region78: #{tpu_custom_call.1} parent=5 // pred_check_branch
        %1509 = sbr.rel (%p1507) target = $region80
      $region79: #{tpu_custom_call.1} parent=5 // pred_region
        %s1510 = ssub.s32 %s26, 2
        // Predicated region
        $region81: #{tpu_custom_call.1} parent=79 // pred_check
          %p1511 = pneg %p334
        $region82: #{tpu_custom_call.1} parent=79 // pred_check_branch
          %1513 = sbr.rel (%p1511) target = $region84
        $region83: #{tpu_custom_call.1} parent=79 // pred_region
          %s1514 = sand.u32 %s319, 1
          %s1515 = scalar_lea.sflag [#allocation3], %s1514
          %s1516 = sand.u32 %s319, 1
          %s1517 = smul.addr %s1516, 8
          %s1518 = scalar_lea.vmem [#allocation2], %s1517
          %1519 = dma.done %s1515, 128
        $region84: #{tpu_custom_call.1} parent=79 // pred_fallthru
          _
        // Predicated region
        $region85: #{tpu_custom_call.1} parent=79 // pred_check
          %p1520 = pneg %p362
        $region86: #{tpu_custom_call.1} parent=79 // pred_check_branch
          %1522 = sbr.rel (%p1520) target = $region88
        $region87: #{tpu_custom_call.1} parent=79 // pred_region
          %s1523 = sand.u32 %s347, 1
          %s1524 = scalar_lea.sflag [#allocation5], %s1523
          %s1525 = sand.u32 %s347, 1
          %s1526 = smul.addr %s1525, 8
          %s1527 = scalar_lea.vmem [#allocation4], %s1526
          %1528 = dma.done %s1524, 128
        $region88: #{tpu_custom_call.1} parent=79 // pred_fallthru
          _
        // Predicated region
        $region89: #{tpu_custom_call.1} parent=79 // pred_check
          %p1529 = pneg %p390
        $region90: #{tpu_custom_call.1} parent=79 // pred_check_branch
          %1531 = sbr.rel (%p1529) target = $region92
        $region91: #{tpu_custom_call.1} parent=79 // pred_region
          %p1532 = scmp.lt.s32.totalorder %s37, 1
          %s1533 = scalar_select %p1532, %s37, 1
          %p1534 = scmp.lt.s32.totalorder %s38, 0
          %s1535 = scalar_select %p1534, %s38, 0
          %s1536 = sadd.s32 %s1535, %s1533
          %s1537 = smul.addr %s1536, 4
          %s1538 = scalar_lea.vmem %s13, %s1537
        $region92: #{tpu_custom_call.1} parent=79 // pred_fallthru
          _
      $region80: #{tpu_custom_call.1} parent=5 // pred_fallthru
        _
    $region6: #{tpu_custom_call.1} parent=1 // loop_footer
      %s30 = sadd.s32 1, %s26
    $region7: #{tpu_custom_call.1} parent=1 // loop_footer_branch
      %25 = sbr.rel target = $region3
    $region8: #{tpu_custom_call.1} parent=1 // loop_exit
      _
    %1539 = vsyncpa [#allocation3], 1
    %s1540 = scalar_lea.sflag [#allocation3], 1
    %1541 = vsyncpa %s1540, 1
    %1542 = vsyncpa [#allocation5], 1
    %s1543 = scalar_lea.sflag [#allocation5], 1
    %1544 = vsyncpa %s1543, 1

</llo_original>
